<compile_context>
chip_gen: v6e
topology: v6e:2x2x1
jax: 0.10.0
libtpu: 0.0.40
codegen_flags: <defaults>
</compile_context>

<pallas_src>
import jax
import jax.numpy as jnp
import numpy as np
from jax import lax
from jax.experimental import pallas as pl
from jax.experimental.pallas import tpu as pltpu

# ----------------------------- problem sizes (small, consistent with WN) --------------------
B = 2            # batch
H = 32           # hidden_channels
T = 16           # sequence length
S = 64           # speaker_embedding_dim
K = 5            # kernel_size
DIL = 1          # dilation
L = 4            # num_layers
PAD = DIL * (K - 1) // 2   # replicate padding amount
C2 = 2 * H       # gated channel width


# ----------------------------- Pallas kernel -------------------------------------------------
def wn_kernel(x_ref, mask_ref, g_ref, cw_ref, sw_ref, b_ref, ow_ref, ob_ref, out_ref):
    """Full WN forward (all L layers) for one batch element.

    The per-layer state x is kept 2H wide: lanes [:H] hold the residual features,
    lanes [H:] hold the running skip-connection sum (starts at 0).  The output
    1x1 conv already produces (res | skip) in that channel order, so the residual
    update and the skip accumulation fuse into a single `(o + x) * mask`.

    x_ref   : (1, T, 2H)    input features | zeros (skip accumulator)
    mask_ref: (1, T, 1)     0/1 time mask
    g_ref   : (1, T, S)     speaker embedding sequence
    cw_ref  : (L, K*2H, 2H) fused dilated-conv weights (tap-major, skip lanes zero-padded)
    sw_ref  : (S, L*2H)     speaker 1x1-conv weights, all layers side by side
    b_ref   : (1, L*2H)     combined conv+speaker bias, all layers
    ow_ref  : (L, H, 2H)    output 1x1-conv weights
    ob_ref  : (L, 1, 2H)    output 1x1-conv bias
    out_ref : (1, T, 2H)    final state; lanes [H:] are the accumulated skips
    """
    x = x_ref[0].astype(jnp.float32)          # (T, 2H)
    g = g_ref[0].astype(jnp.float32)          # (T, S)

    # Hoisted broadcast of the 0/1 time mask to the full lane width (broadcast_in_dim is
    # not CSE'd by JAX, so do it once, not once per layer).
    mask = jnp.broadcast_to(mask_ref[0].astype(jnp.float32), (T, C2))   # (T, 2H)

    # Speaker conditioning for ALL layers in one wide matmul (off the serial layer chain);
    # conv + speaker biases are pre-folded into b_ref by the wrapper.
    spk_all = jnp.dot(g, sw_ref[...], preferred_element_type=jnp.float32) + b_ref[...]
    spk = [spk_all[:, l * C2:(l + 1) * C2] for l in range(L)]            # each (T, 2H)

    # Row masks that fix the cyclic wrap of the time rolls (replicate / edge padding).
    # Hoisted out of the layer loop; they only depend on T / PAD, not on x.
    row = lax.broadcasted_iota(jnp.int32, (T, C2), 0)
    top_mask = [row < d for d in range(1, PAD + 1)]          # rows that wrapped around the top
    bot_mask = [row >= T - d for d in range(1, PAD + 1)]     # rows that wrapped around the bottom

    for l in range(L):  # static unrolled layer loop (L=4, short -> keep visible to LLO scheduler)
        # ---- sliding-window matrix: K time-shifted, replicate-padded copies of x ----
        row0 = jnp.broadcast_to(x[0:1, :], (T, C2))
        rowN = jnp.broadcast_to(x[T - 1:T, :], (T, C2))
        taps = []
        for k in range(K):
            d = k * DIL - PAD
            if d == 0:
                taps.append(x)
            else:
                rolled = pltpu.roll(x, shift=(-d) % T, axis=0)   # rolled[t] = x[(t + d) % T]
                if d < 0:
                    taps.append(jnp.where(top_mask[-d - 1], row0, rolled))
                else:
                    taps.append(jnp.where(bot_mask[d - 1], rowN, rolled))
        win = jnp.concatenate(taps, axis=-1)                     # (T, K*2H)

        # ---- dilated conv (all K taps fused in one MXU matmul) + speaker conditioning ----
        z = jnp.dot(win, cw_ref[l], preferred_element_type=jnp.float32) + spk[l]   # (T, 2H)

        # ---- gated activation (tanh/sigmoid hit the EUP slot) ----
        gated = jnp.tanh(z[:, :H]) * jax.nn.sigmoid(z[:, H:])    # (T, H)

        # ---- output 1x1 conv: lanes [:H] residual, [H:] skip ----
        o = jnp.dot(gated, ow_ref[l], preferred_element_type=jnp.float32) + ob_ref[l]

        # Fused residual update + skip accumulation (mask is 0/1, so re-masking is exact).
        x = (o + x) * mask

    out_ref[0] = x.astype(out_ref.dtype)


def wn_pallas(x_btc, mask_bt1, g_bts, cw, sw, bias, ow, ob):
    """x_btc: (B, T, H); mask_bt1: (B, T, 1); g_bts: (B, T, S). Returns skip sum (B, T, H)."""
    # Widen the state: lanes [:H] = features, lanes [H:] = skip accumulator (zeros).
    x2 = jnp.concatenate([x_btc, jnp.zeros_like(x_btc)], axis=-1)        # (B, T, 2H)
    in_specs = [
        pl.BlockSpec((1, T, C2), lambda i: (i, 0, 0)),
        pl.BlockSpec((1, T, 1), lambda i: (i, 0, 0)),
        pl.BlockSpec((1, T, S), lambda i: (i, 0, 0)),
        # Weights: constant block index -> fetched once, not re-DMA'd across grid steps.
        pl.BlockSpec((L, K * C2, C2), lambda i: (0, 0, 0)),
        pl.BlockSpec((S, L * C2), lambda i: (0, 0)),
        pl.BlockSpec((1, L * C2), lambda i: (0, 0)),
        pl.BlockSpec((L, H, C2), lambda i: (0, 0, 0)),
        pl.BlockSpec((L, 1, C2), lambda i: (0, 0, 0)),
    ]
    out_specs = pl.BlockSpec((1, T, C2), lambda i: (i, 0, 0))
    out = pl.pallas_call(
        wn_kernel,
        out_shape=jax.ShapeDtypeStruct((B, T, C2), jnp.float32),
        grid_spec=pltpu.PrefetchScalarGridSpec(
            num_scalar_prefetch=0,
            grid=(B,),
            in_specs=in_specs,
            out_specs=out_specs,
        ),
        compiler_params=pltpu.CompilerParams(dimension_semantics=("parallel",)),
    )(x2, mask_bt1, g_bts, cw, sw, bias, ow, ob)
    return out[:, :, H:]   # accumulated skip connections


# ----------------------------- parameter construction (glue, plain JAX) ----------------------
def make_weight_norm_conv(key, c_out, c_in, k):
    """Deterministic weight-norm Conv1d params -> effective torch-layout weight (c_out,c_in,k), bias."""
    kv, kg, kb = jax.random.split(key, 3)
    v = jax.random.uniform(kv, (c_out, c_in, k), jnp.float32, -0.1, 0.1)
    g_scale = jax.random.uniform(kg, (c_out,), jnp.float32, 0.5, 1.5)
    bias = jax.random.uniform(kb, (c_out,), jnp.float32, -0.1, 0.1)
    norm = jnp.sqrt(jnp.sum(v * v, axis=(1, 2), keepdims=True) + 1e-12)
    w = g_scale[:, None, None] * v / norm   # weight-norm reparameterization (folded on host)
    return w, bias


def make_params(key):
    cw_l, sw_l, b_l, ow_l, ob_l = [], [], [], [], []
    torch_params = []
    zeros_pad = jnp.zeros((K, H, C2), jnp.float32)
    for _ in range(L):
        k1, k2, k3, key = jax.random.split(key, 4)
        w_spk, b_spk = make_weight_norm_conv(k1, C2, S, 1)
        w_conv, b_conv = make_weight_norm_conv(k2, C2, H, K)
        w_out, b_out = make_weight_norm_conv(k3, C2, H, 1)
        torch_params.append((w_conv, b_conv, w_spk, b_spk, w_out, b_out))
        # kernel layouts
        cw_kh = jnp.transpose(w_conv, (2, 1, 0))                    # (K, H, 2H)
        cw_pad = jnp.concatenate([cw_kh, zeros_pad], axis=1)        # (K, 2H, 2H): skip lanes -> 0
        cw_l.append(cw_pad.reshape(K * C2, C2))                     # (K*2H, 2H)
        sw_l.append(jnp.transpose(w_spk[:, :, 0], (1, 0)))          # (S, 2H)
        b_l.append((b_conv + b_spk)[None, :])                       # (1, 2H) combined bias
        ow_l.append(jnp.transpose(w_out[:, :, 0], (1, 0)))          # (H, 2H)
        ob_l.append(b_out[None, :])                                 # (1, 2H)
    kernel_params = (jnp.stack(cw_l),                 # (L, K*2H, 2H)
                     jnp.concatenate(sw_l, axis=1),   # (S, L*2H)
                     jnp.concatenate(b_l, axis=1),    # (1, L*2H)
                     jnp.stack(ow_l),                 # (L, H, 2H)
                     jnp.stack(ob_l))                 # (L, 1, 2H)
    return kernel_params, torch_params


# ----------------------------- pure-JAX reference (torch NCW semantics) ----------------------
def ref_wn(x_bct, mask_b1t, g_bst, torch_params):
    x = x_bct
    output = None
    for (w_conv, b_conv, w_spk, b_spk, w_out, b_out) in torch_params:
        x_pad = jnp.pad(x, ((0, 0), (0, 0), (PAD, PAD)), mode='edge')
        conv = lax.conv_general_dilated(
            x_pad, w_conv, window_strides=(1,), padding='VALID',
            rhs_dilation=(DIL,), dimension_numbers=('NCH', 'OIH', 'NCH'))
        conv = conv + b_conv[None, :, None]
        spk = jnp.einsum('bst,os->bot', g_bst, w_spk[:, :, 0]) + b_spk[None, :, None]
        z = conv + spk
        x0, x1 = z[:, :H, :], z[:, H:, :]
        gated = jnp.tanh(x0) * jax.nn.sigmoid(x1)
        o = jnp.einsum('bht,oh->bot', gated, w_out[:, :, 0]) + b_out[None, :, None]
        out_part, skip = o[:, :H, :], o[:, H:, :]
        x = (out_part + x) * mask_b1t
        skip = skip * mask_b1t
        output = skip if output is None else output + skip
    return output


# ----------------------------- main -----------------------------------------------------------
if __name__ == "__main__":
    key = jax.random.PRNGKey(0)
    kx, kg, kp = jax.random.split(key, 3)

    # Torch-convention inputs: x (B, H, T), g (B, S, T), x_mask (B, 1, T)
    x_bct = jax.random.normal(kx, (B, H, T), jnp.float32)
    g_bst = jax.random.normal(kg, (B, S, T), jnp.float32)
    lengths = jnp.array([T, T - 4])
    mask_b1t = (jnp.arange(T)[None, :] < lengths[:, None]).astype(jnp.float32)[:, None, :]

    kernel_params, torch_params = make_params(kp)

    # Transpose to kernel layout (B, T, C)
    x_btc = jnp.transpose(x_bct, (0, 2, 1))
    g_bts = jnp.transpose(g_bst, (0, 2, 1))
    mask_bt1 = jnp.transpose(mask_b1t, (0, 2, 1))

    out = wn_pallas(x_btc, mask_bt1, g_bts, *kernel_params)
    out = jax.block_until_ready(out)

    # Sanity check against pure-JAX reference (torch NCW semantics)
    ref = ref_wn(x_bct, mask_b1t, g_bst, torch_params)      # (B, H, T) skip sum
    ref_btc = jnp.transpose(ref, (0, 2, 1))
    assert np.allclose(np.asarray(out), np.asarray(ref_btc), atol=1e-4, rtol=1e-4)

    print("KERNEL_OK")
</pallas_src>

<mosaic_0001>
module attributes {stable_mosaic.version = 11 : i64} {
  func.func @wn_kernel(%arg0: i32, %arg1: memref<1x16x64xf32, #tpu.memory_space<vmem>>, %arg2: memref<1x16x1xf32, #tpu.memory_space<vmem>>, %arg3: memref<1x16x64xf32, #tpu.memory_space<vmem>>, %arg4: memref<4x320x64xf32, #tpu.memory_space<vmem>>, %arg5: memref<64x256xf32, #tpu.memory_space<vmem>>, %arg6: memref<1x256xf32, #tpu.memory_space<vmem>>, %arg7: memref<4x32x64xf32, #tpu.memory_space<vmem>>, %arg8: memref<4x1x64xf32, #tpu.memory_space<vmem>>, %arg9: memref<1x16x64xf32, #tpu.memory_space<vmem>>) attributes {dimension_semantics = [#tpu.dimension_semantics<parallel>], iteration_bounds = array<i64: 2>, scalar_prefetch = 0 : i64, scratch_operands = 0 : i64, tpu.core_type = #tpu.core_type<tc>, window_params = [{transform_indices = @transform_0, window_bounds = array<i64: 1, 16, 64>}, {transform_indices = @transform_1, window_bounds = array<i64: 1, 16, 1>}, {transform_indices = @transform_2, window_bounds = array<i64: 1, 16, 64>}, {pipeline_mode = #tpu.pipeline_mode<synchronous>, transform_indices = @transform_3, window_bounds = array<i64: 4, 320, 64>}, {pipeline_mode = #tpu.pipeline_mode<synchronous>, transform_indices = @transform_4, window_bounds = array<i64: 64, 256>}, {pipeline_mode = #tpu.pipeline_mode<synchronous>, transform_indices = @transform_5, window_bounds = array<i64: 1, 256>}, {pipeline_mode = #tpu.pipeline_mode<synchronous>, transform_indices = @transform_6, window_bounds = array<i64: 4, 32, 64>}, {pipeline_mode = #tpu.pipeline_mode<synchronous>, transform_indices = @transform_7, window_bounds = array<i64: 4, 1, 64>}, {transform_indices = @transform_8, window_bounds = array<i64: 1, 16, 64>}]} {
    %c0 = arith.constant 0 : index
    %c0_0 = arith.constant 0 : index
    %c0_1 = arith.constant 0 : index
    %0 = vector.load %arg1[%c0, %c0_0, %c0_1] : memref<1x16x64xf32, #tpu.memory_space<vmem>>, vector<1x16x64xf32>
    %1 = vector.shape_cast %0 : vector<1x16x64xf32> to vector<16x64xf32>
    %c0_2 = arith.constant 0 : index
    %c0_3 = arith.constant 0 : index
    %c0_4 = arith.constant 0 : index
    %2 = vector.load %arg3[%c0_2, %c0_3, %c0_4] : memref<1x16x64xf32, #tpu.memory_space<vmem>>, vector<1x16x64xf32>
    %3 = vector.shape_cast %2 : vector<1x16x64xf32> to vector<16x64xf32>
    %c0_5 = arith.constant 0 : index
    %c0_6 = arith.constant 0 : index
    %c0_7 = arith.constant 0 : index
    %4 = vector.load %arg2[%c0_5, %c0_6, %c0_7] : memref<1x16x1xf32, #tpu.memory_space<vmem>>, vector<1x16x1xf32>
    %5 = vector.shape_cast %4 : vector<1x16x1xf32> to vector<16x1xf32>
    %6 = vector.shape_cast %5 : vector<16x1xf32> to vector<16x1xf32>
    %7 = vector.broadcast %6 : vector<16x1xf32> to vector<16x64xf32>
    %c0_8 = arith.constant 0 : index
    %c0_9 = arith.constant 0 : index
    %8 = vector.load %arg5[%c0_8, %c0_9] : memref<64x256xf32, #tpu.memory_space<vmem>>, vector<64x256xf32>
    %cst = arith.constant dense<0.000000e+00> : vector<16x256xf32>
    %9 = tpu.matmul %3, %8, %cst {dimension_numbers = #tpu.dot_dimension_numbers<[1], [0], [0], [1], [0, 0, 1, 1], [], []>} : vector<16x64xf32>, vector<64x256xf32>, vector<16x256xf32> -> vector<16x256xf32>
    %c0_10 = arith.constant 0 : index
    %c0_11 = arith.constant 0 : index
    %10 = vector.load %arg6[%c0_10, %c0_11] : memref<1x256xf32, #tpu.memory_space<vmem>>, vector<1x256xf32>
    %11 = vector.broadcast %10 : vector<1x256xf32> to vector<16x256xf32>
    %12 = arith.addf %9, %11 : vector<16x256xf32>
    %13 = vector.extract_strided_slice %12 {offsets = [0, 0], sizes = [16, 64], strides = [1, 1]} : vector<16x256xf32> to vector<16x64xf32>
    %14 = vector.extract_strided_slice %12 {offsets = [0, 64], sizes = [16, 64], strides = [1, 1]} : vector<16x256xf32> to vector<16x64xf32>
    %15 = vector.extract_strided_slice %12 {offsets = [0, 128], sizes = [16, 64], strides = [1, 1]} : vector<16x256xf32> to vector<16x64xf32>
    %16 = vector.extract_strided_slice %12 {offsets = [0, 192], sizes = [16, 64], strides = [1, 1]} : vector<16x256xf32> to vector<16x64xf32>
    %17 = tpu.iota {dimensions = array<i32: 0>} : vector<16x64xi32>
    %c1_i32 = arith.constant 1 : i32
    %18 = vector.broadcast %c1_i32 : i32 to vector<16x64xi32>
    %19 = arith.cmpi slt, %17, %18 : vector<16x64xi32>
    %c2_i32 = arith.constant 2 : i32
    %20 = vector.broadcast %c2_i32 : i32 to vector<16x64xi32>
    %21 = arith.cmpi slt, %17, %20 : vector<16x64xi32>
    %c15_i32 = arith.constant 15 : i32
    %22 = vector.broadcast %c15_i32 : i32 to vector<16x64xi32>
    %23 = arith.cmpi sge, %17, %22 : vector<16x64xi32>
    %c14_i32 = arith.constant 14 : i32
    %24 = vector.broadcast %c14_i32 : i32 to vector<16x64xi32>
    %25 = arith.cmpi sge, %17, %24 : vector<16x64xi32>
    %26 = vector.extract_strided_slice %1 {offsets = [0, 0], sizes = [1, 64], strides = [1, 1]} : vector<16x64xf32> to vector<1x64xf32>
    %27 = vector.shape_cast %26 : vector<1x64xf32> to vector<1x64xf32>
    %28 = vector.broadcast %27 : vector<1x64xf32> to vector<16x64xf32>
    %29 = vector.extract_strided_slice %1 {offsets = [15, 0], sizes = [1, 64], strides = [1, 1]} : vector<16x64xf32> to vector<1x64xf32>
    %30 = vector.shape_cast %29 : vector<1x64xf32> to vector<1x64xf32>
    %31 = vector.broadcast %30 : vector<1x64xf32> to vector<16x64xf32>
    %c2_i32_12 = arith.constant 2 : i32
    %32 = tpu.dynamic_rotate %1 by %c2_i32_12 dim 0 : vector<16x64xf32>, i32 -> vector<16x64xf32>
    %33 = arith.select %21, %28, %32 : vector<16x64xi1>, vector<16x64xf32>
    %c1_i32_13 = arith.constant 1 : i32
    %34 = tpu.dynamic_rotate %1 by %c1_i32_13 dim 0 : vector<16x64xf32>, i32 -> vector<16x64xf32>
    %35 = arith.select %19, %28, %34 : vector<16x64xi1>, vector<16x64xf32>
    %c15_i32_14 = arith.constant 15 : i32
    %36 = tpu.dynamic_rotate %1 by %c15_i32_14 dim 0 : vector<16x64xf32>, i32 -> vector<16x64xf32>
    %37 = arith.select %23, %31, %36 : vector<16x64xi1>, vector<16x64xf32>
    %c14_i32_15 = arith.constant 14 : i32
    %38 = tpu.dynamic_rotate %1 by %c14_i32_15 dim 0 : vector<16x64xf32>, i32 -> vector<16x64xf32>
    %39 = arith.select %25, %31, %38 : vector<16x64xi1>, vector<16x64xf32>
    %40 = tpu.concatenate %33, %35, %1, %37, %39 in 1 : vector<16x64xf32>, vector<16x64xf32>, vector<16x64xf32>, vector<16x64xf32>, vector<16x64xf32> -> vector<16x320xf32>
    %c0_16 = arith.constant 0 : index
    %c0_17 = arith.constant 0 : index
    %c0_18 = arith.constant 0 : index
    %41 = vector.load %arg4[%c0_16, %c0_17, %c0_18] : memref<4x320x64xf32, #tpu.memory_space<vmem>>, vector<1x320x64xf32>
    %42 = vector.shape_cast %41 : vector<1x320x64xf32> to vector<320x64xf32>
    %cst_19 = arith.constant dense<0.000000e+00> : vector<16x64xf32>
    %43 = tpu.matmul %40, %42, %cst_19 {dimension_numbers = #tpu.dot_dimension_numbers<[1], [0], [0], [1], [0, 0, 1, 1], [], []>} : vector<16x320xf32>, vector<320x64xf32>, vector<16x64xf32> -> vector<16x64xf32>
    %44 = arith.addf %43, %13 : vector<16x64xf32>
    %45 = vector.extract_strided_slice %44 {offsets = [0, 0], sizes = [16, 32], strides = [1, 1]} : vector<16x64xf32> to vector<16x32xf32>
    %46 = math.tanh %45 : vector<16x32xf32>
    %47 = vector.extract_strided_slice %44 {offsets = [0, 32], sizes = [16, 32], strides = [1, 1]} : vector<16x64xf32> to vector<16x32xf32>
    %48 = arith.negf %47 : vector<16x32xf32>
    %49 = math.exp %48 : vector<16x32xf32>
    %cst_20 = arith.constant 1.000000e+00 : f32
    %50 = vector.broadcast %cst_20 : f32 to vector<16x32xf32>
    %51 = arith.addf %50, %49 : vector<16x32xf32>
    %52 = arith.divf %50, %51 : vector<16x32xf32>
    %53 = arith.mulf %46, %52 : vector<16x32xf32>
    %c0_21 = arith.constant 0 : index
    %c0_22 = arith.constant 0 : index
    %c0_23 = arith.constant 0 : index
    %54 = vector.load %arg7[%c0_21, %c0_22, %c0_23] : memref<4x32x64xf32, #tpu.memory_space<vmem>>, vector<1x32x64xf32>
    %55 = vector.shape_cast %54 : vector<1x32x64xf32> to vector<32x64xf32>
    %cst_24 = arith.constant dense<0.000000e+00> : vector<16x64xf32>
    %56 = tpu.matmul %53, %55, %cst_24 {dimension_numbers = #tpu.dot_dimension_numbers<[1], [0], [0], [1], [0, 0, 1, 1], [], []>} : vector<16x32xf32>, vector<32x64xf32>, vector<16x64xf32> -> vector<16x64xf32>
    %c0_25 = arith.constant 0 : index
    %c0_26 = arith.constant 0 : index
    %c0_27 = arith.constant 0 : index
    %57 = vector.load %arg8[%c0_25, %c0_26, %c0_27] : memref<4x1x64xf32, #tpu.memory_space<vmem>>, vector<1x1x64xf32>
    %58 = vector.shape_cast %57 : vector<1x1x64xf32> to vector<1x64xf32>
    %59 = vector.broadcast %58 : vector<1x64xf32> to vector<16x64xf32>
    %60 = arith.addf %56, %59 : vector<16x64xf32>
    %61 = arith.addf %60, %1 : vector<16x64xf32>
    %62 = arith.mulf %61, %7 : vector<16x64xf32>
    %63 = vector.extract_strided_slice %62 {offsets = [0, 0], sizes = [1, 64], strides = [1, 1]} : vector<16x64xf32> to vector<1x64xf32>
    %64 = vector.shape_cast %63 : vector<1x64xf32> to vector<1x64xf32>
    %65 = vector.broadcast %64 : vector<1x64xf32> to vector<16x64xf32>
    %66 = vector.extract_strided_slice %62 {offsets = [15, 0], sizes = [1, 64], strides = [1, 1]} : vector<16x64xf32> to vector<1x64xf32>
    %67 = vector.shape_cast %66 : vector<1x64xf32> to vector<1x64xf32>
    %68 = vector.broadcast %67 : vector<1x64xf32> to vector<16x64xf32>
    %c2_i32_28 = arith.constant 2 : i32
    %69 = tpu.dynamic_rotate %62 by %c2_i32_28 dim 0 : vector<16x64xf32>, i32 -> vector<16x64xf32>
    %70 = arith.select %21, %65, %69 : vector<16x64xi1>, vector<16x64xf32>
    %c1_i32_29 = arith.constant 1 : i32
    %71 = tpu.dynamic_rotate %62 by %c1_i32_29 dim 0 : vector<16x64xf32>, i32 -> vector<16x64xf32>
    %72 = arith.select %19, %65, %71 : vector<16x64xi1>, vector<16x64xf32>
    %c15_i32_30 = arith.constant 15 : i32
    %73 = tpu.dynamic_rotate %62 by %c15_i32_30 dim 0 : vector<16x64xf32>, i32 -> vector<16x64xf32>
    %74 = arith.select %23, %68, %73 : vector<16x64xi1>, vector<16x64xf32>
    %c14_i32_31 = arith.constant 14 : i32
    %75 = tpu.dynamic_rotate %62 by %c14_i32_31 dim 0 : vector<16x64xf32>, i32 -> vector<16x64xf32>
    %76 = arith.select %25, %68, %75 : vector<16x64xi1>, vector<16x64xf32>
    %77 = tpu.concatenate %70, %72, %62, %74, %76 in 1 : vector<16x64xf32>, vector<16x64xf32>, vector<16x64xf32>, vector<16x64xf32>, vector<16x64xf32> -> vector<16x320xf32>
    %c1 = arith.constant 1 : index
    %c0_32 = arith.constant 0 : index
    %c0_33 = arith.constant 0 : index
    %78 = vector.load %arg4[%c1, %c0_32, %c0_33] : memref<4x320x64xf32, #tpu.memory_space<vmem>>, vector<1x320x64xf32>
    %79 = vector.shape_cast %78 : vector<1x320x64xf32> to vector<320x64xf32>
    %cst_34 = arith.constant dense<0.000000e+00> : vector<16x64xf32>
    %80 = tpu.matmul %77, %79, %cst_34 {dimension_numbers = #tpu.dot_dimension_numbers<[1], [0], [0], [1], [0, 0, 1, 1], [], []>} : vector<16x320xf32>, vector<320x64xf32>, vector<16x64xf32> -> vector<16x64xf32>
    %81 = arith.addf %80, %14 : vector<16x64xf32>
    %82 = vector.extract_strided_slice %81 {offsets = [0, 0], sizes = [16, 32], strides = [1, 1]} : vector<16x64xf32> to vector<16x32xf32>
    %83 = math.tanh %82 : vector<16x32xf32>
    %84 = vector.extract_strided_slice %81 {offsets = [0, 32], sizes = [16, 32], strides = [1, 1]} : vector<16x64xf32> to vector<16x32xf32>
    %85 = arith.negf %84 : vector<16x32xf32>
    %86 = math.exp %85 : vector<16x32xf32>
    %cst_35 = arith.constant 1.000000e+00 : f32
    %87 = vector.broadcast %cst_35 : f32 to vector<16x32xf32>
    %88 = arith.addf %87, %86 : vector<16x32xf32>
    %89 = arith.divf %87, %88 : vector<16x32xf32>
    %90 = arith.mulf %83, %89 : vector<16x32xf32>
    %c1_36 = arith.constant 1 : index
    %c0_37 = arith.constant 0 : index
    %c0_38 = arith.constant 0 : index
    %91 = vector.load %arg7[%c1_36, %c0_37, %c0_38] : memref<4x32x64xf32, #tpu.memory_space<vmem>>, vector<1x32x64xf32>
    %92 = vector.shape_cast %91 : vector<1x32x64xf32> to vector<32x64xf32>
    %cst_39 = arith.constant dense<0.000000e+00> : vector<16x64xf32>
    %93 = tpu.matmul %90, %92, %cst_39 {dimension_numbers = #tpu.dot_dimension_numbers<[1], [0], [0], [1], [0, 0, 1, 1], [], []>} : vector<16x32xf32>, vector<32x64xf32>, vector<16x64xf32> -> vector<16x64xf32>
    %c1_40 = arith.constant 1 : index
    %c0_41 = arith.constant 0 : index
    %c0_42 = arith.constant 0 : index
    %94 = vector.load %arg8[%c1_40, %c0_41, %c0_42] : memref<4x1x64xf32, #tpu.memory_space<vmem>>, vector<1x1x64xf32>
    %95 = vector.shape_cast %94 : vector<1x1x64xf32> to vector<1x64xf32>
    %96 = vector.broadcast %95 : vector<1x64xf32> to vector<16x64xf32>
    %97 = arith.addf %93, %96 : vector<16x64xf32>
    %98 = arith.addf %97, %62 : vector<16x64xf32>
    %99 = arith.mulf %98, %7 : vector<16x64xf32>
    %100 = vector.extract_strided_slice %99 {offsets = [0, 0], sizes = [1, 64], strides = [1, 1]} : vector<16x64xf32> to vector<1x64xf32>
    %101 = vector.shape_cast %100 : vector<1x64xf32> to vector<1x64xf32>
    %102 = vector.broadcast %101 : vector<1x64xf32> to vector<16x64xf32>
    %103 = vector.extract_strided_slice %99 {offsets = [15, 0], sizes = [1, 64], strides = [1, 1]} : vector<16x64xf32> to vector<1x64xf32>
    %104 = vector.shape_cast %103 : vector<1x64xf32> to vector<1x64xf32>
    %105 = vector.broadcast %104 : vector<1x64xf32> to vector<16x64xf32>
    %c2_i32_43 = arith.constant 2 : i32
    %106 = tpu.dynamic_rotate %99 by %c2_i32_43 dim 0 : vector<16x64xf32>, i32 -> vector<16x64xf32>
    %107 = arith.select %21, %102, %106 : vector<16x64xi1>, vector<16x64xf32>
    %c1_i32_44 = arith.constant 1 : i32
    %108 = tpu.dynamic_rotate %99 by %c1_i32_44 dim 0 : vector<16x64xf32>, i32 -> vector<16x64xf32>
    %109 = arith.select %19, %102, %108 : vector<16x64xi1>, vector<16x64xf32>
    %c15_i32_45 = arith.constant 15 : i32
    %110 = tpu.dynamic_rotate %99 by %c15_i32_45 dim 0 : vector<16x64xf32>, i32 -> vector<16x64xf32>
    %111 = arith.select %23, %105, %110 : vector<16x64xi1>, vector<16x64xf32>
    %c14_i32_46 = arith.constant 14 : i32
    %112 = tpu.dynamic_rotate %99 by %c14_i32_46 dim 0 : vector<16x64xf32>, i32 -> vector<16x64xf32>
    %113 = arith.select %25, %105, %112 : vector<16x64xi1>, vector<16x64xf32>
    %114 = tpu.concatenate %107, %109, %99, %111, %113 in 1 : vector<16x64xf32>, vector<16x64xf32>, vector<16x64xf32>, vector<16x64xf32>, vector<16x64xf32> -> vector<16x320xf32>
    %c2 = arith.constant 2 : index
    %c0_47 = arith.constant 0 : index
    %c0_48 = arith.constant 0 : index
    %115 = vector.load %arg4[%c2, %c0_47, %c0_48] : memref<4x320x64xf32, #tpu.memory_space<vmem>>, vector<1x320x64xf32>
    %116 = vector.shape_cast %115 : vector<1x320x64xf32> to vector<320x64xf32>
    %cst_49 = arith.constant dense<0.000000e+00> : vector<16x64xf32>
    %117 = tpu.matmul %114, %116, %cst_49 {dimension_numbers = #tpu.dot_dimension_numbers<[1], [0], [0], [1], [0, 0, 1, 1], [], []>} : vector<16x320xf32>, vector<320x64xf32>, vector<16x64xf32> -> vector<16x64xf32>
    %118 = arith.addf %117, %15 : vector<16x64xf32>
    %119 = vector.extract_strided_slice %118 {offsets = [0, 0], sizes = [16, 32], strides = [1, 1]} : vector<16x64xf32> to vector<16x32xf32>
    %120 = math.tanh %119 : vector<16x32xf32>
    %121 = vector.extract_strided_slice %118 {offsets = [0, 32], sizes = [16, 32], strides = [1, 1]} : vector<16x64xf32> to vector<16x32xf32>
    %122 = arith.negf %121 : vector<16x32xf32>
    %123 = math.exp %122 : vector<16x32xf32>
    %cst_50 = arith.constant 1.000000e+00 : f32
    %124 = vector.broadcast %cst_50 : f32 to vector<16x32xf32>
    %125 = arith.addf %124, %123 : vector<16x32xf32>
    %126 = arith.divf %124, %125 : vector<16x32xf32>
    %127 = arith.mulf %120, %126 : vector<16x32xf32>
    %c2_51 = arith.constant 2 : index
    %c0_52 = arith.constant 0 : index
    %c0_53 = arith.constant 0 : index
    %128 = vector.load %arg7[%c2_51, %c0_52, %c0_53] : memref<4x32x64xf32, #tpu.memory_space<vmem>>, vector<1x32x64xf32>
    %129 = vector.shape_cast %128 : vector<1x32x64xf32> to vector<32x64xf32>
    %cst_54 = arith.constant dense<0.000000e+00> : vector<16x64xf32>
    %130 = tpu.matmul %127, %129, %cst_54 {dimension_numbers = #tpu.dot_dimension_numbers<[1], [0], [0], [1], [0, 0, 1, 1], [], []>} : vector<16x32xf32>, vector<32x64xf32>, vector<16x64xf32> -> vector<16x64xf32>
    %c2_55 = arith.constant 2 : index
    %c0_56 = arith.constant 0 : index
    %c0_57 = arith.constant 0 : index
    %131 = vector.load %arg8[%c2_55, %c0_56, %c0_57] : memref<4x1x64xf32, #tpu.memory_space<vmem>>, vector<1x1x64xf32>
    %132 = vector.shape_cast %131 : vector<1x1x64xf32> to vector<1x64xf32>
    %133 = vector.broadcast %132 : vector<1x64xf32> to vector<16x64xf32>
    %134 = arith.addf %130, %133 : vector<16x64xf32>
    %135 = arith.addf %134, %99 : vector<16x64xf32>
    %136 = arith.mulf %135, %7 : vector<16x64xf32>
    %137 = vector.extract_strided_slice %136 {offsets = [0, 0], sizes = [1, 64], strides = [1, 1]} : vector<16x64xf32> to vector<1x64xf32>
    %138 = vector.shape_cast %137 : vector<1x64xf32> to vector<1x64xf32>
    %139 = vector.broadcast %138 : vector<1x64xf32> to vector<16x64xf32>
    %140 = vector.extract_strided_slice %136 {offsets = [15, 0], sizes = [1, 64], strides = [1, 1]} : vector<16x64xf32> to vector<1x64xf32>
    %141 = vector.shape_cast %140 : vector<1x64xf32> to vector<1x64xf32>
    %142 = vector.broadcast %141 : vector<1x64xf32> to vector<16x64xf32>
    %c2_i32_58 = arith.constant 2 : i32
    %143 = tpu.dynamic_rotate %136 by %c2_i32_58 dim 0 : vector<16x64xf32>, i32 -> vector<16x64xf32>
    %144 = arith.select %21, %139, %143 : vector<16x64xi1>, vector<16x64xf32>
    %c1_i32_59 = arith.constant 1 : i32
    %145 = tpu.dynamic_rotate %136 by %c1_i32_59 dim 0 : vector<16x64xf32>, i32 -> vector<16x64xf32>
    %146 = arith.select %19, %139, %145 : vector<16x64xi1>, vector<16x64xf32>
    %c15_i32_60 = arith.constant 15 : i32
    %147 = tpu.dynamic_rotate %136 by %c15_i32_60 dim 0 : vector<16x64xf32>, i32 -> vector<16x64xf32>
    %148 = arith.select %23, %142, %147 : vector<16x64xi1>, vector<16x64xf32>
    %c14_i32_61 = arith.constant 14 : i32
    %149 = tpu.dynamic_rotate %136 by %c14_i32_61 dim 0 : vector<16x64xf32>, i32 -> vector<16x64xf32>
    %150 = arith.select %25, %142, %149 : vector<16x64xi1>, vector<16x64xf32>
    %151 = tpu.concatenate %144, %146, %136, %148, %150 in 1 : vector<16x64xf32>, vector<16x64xf32>, vector<16x64xf32>, vector<16x64xf32>, vector<16x64xf32> -> vector<16x320xf32>
    %c3 = arith.constant 3 : index
    %c0_62 = arith.constant 0 : index
    %c0_63 = arith.constant 0 : index
    %152 = vector.load %arg4[%c3, %c0_62, %c0_63] : memref<4x320x64xf32, #tpu.memory_space<vmem>>, vector<1x320x64xf32>
    %153 = vector.shape_cast %152 : vector<1x320x64xf32> to vector<320x64xf32>
    %cst_64 = arith.constant dense<0.000000e+00> : vector<16x64xf32>
    %154 = tpu.matmul %151, %153, %cst_64 {dimension_numbers = #tpu.dot_dimension_numbers<[1], [0], [0], [1], [0, 0, 1, 1], [], []>} : vector<16x320xf32>, vector<320x64xf32>, vector<16x64xf32> -> vector<16x64xf32>
    %155 = arith.addf %154, %16 : vector<16x64xf32>
    %156 = vector.extract_strided_slice %155 {offsets = [0, 0], sizes = [16, 32], strides = [1, 1]} : vector<16x64xf32> to vector<16x32xf32>
    %157 = math.tanh %156 : vector<16x32xf32>
    %158 = vector.extract_strided_slice %155 {offsets = [0, 32], sizes = [16, 32], strides = [1, 1]} : vector<16x64xf32> to vector<16x32xf32>
    %159 = arith.negf %158 : vector<16x32xf32>
    %160 = math.exp %159 : vector<16x32xf32>
    %cst_65 = arith.constant 1.000000e+00 : f32
    %161 = vector.broadcast %cst_65 : f32 to vector<16x32xf32>
    %162 = arith.addf %161, %160 : vector<16x32xf32>
    %163 = arith.divf %161, %162 : vector<16x32xf32>
    %164 = arith.mulf %157, %163 : vector<16x32xf32>
    %c3_66 = arith.constant 3 : index
    %c0_67 = arith.constant 0 : index
    %c0_68 = arith.constant 0 : index
    %165 = vector.load %arg7[%c3_66, %c0_67, %c0_68] : memref<4x32x64xf32, #tpu.memory_space<vmem>>, vector<1x32x64xf32>
    %166 = vector.shape_cast %165 : vector<1x32x64xf32> to vector<32x64xf32>
    %cst_69 = arith.constant dense<0.000000e+00> : vector<16x64xf32>
    %167 = tpu.matmul %164, %166, %cst_69 {dimension_numbers = #tpu.dot_dimension_numbers<[1], [0], [0], [1], [0, 0, 1, 1], [], []>} : vector<16x32xf32>, vector<32x64xf32>, vector<16x64xf32> -> vector<16x64xf32>
    %c3_70 = arith.constant 3 : index
    %c0_71 = arith.constant 0 : index
    %c0_72 = arith.constant 0 : index
    %168 = vector.load %arg8[%c3_70, %c0_71, %c0_72] : memref<4x1x64xf32, #tpu.memory_space<vmem>>, vector<1x1x64xf32>
    %169 = vector.shape_cast %168 : vector<1x1x64xf32> to vector<1x64xf32>
    %170 = vector.broadcast %169 : vector<1x64xf32> to vector<16x64xf32>
    %171 = arith.addf %167, %170 : vector<16x64xf32>
    %172 = arith.addf %171, %136 : vector<16x64xf32>
    %173 = arith.mulf %172, %7 : vector<16x64xf32>
    %c0_73 = arith.constant 0 : index
    %c0_74 = arith.constant 0 : index
    %c0_75 = arith.constant 0 : index
    %174 = vector.load %arg9[%c0_73, %c0_74, %c0_75] : memref<1x16x64xf32, #tpu.memory_space<vmem>>, vector<1x16x64xf32>
    %175 = vector.shape_cast %174 : vector<1x16x64xf32> to vector<16x64xf32>
    %176 = vector.shape_cast %173 : vector<16x64xf32> to vector<1x16x64xf32>
    tpu.vector_store %arg9[%c0_73, %c0_74, %c0_75], %176 {strides = array<i32>} : memref<1x16x64xf32, #tpu.memory_space<vmem>>, vector<1x16x64xf32>,
    return
  }
  func.func @transform_0(%arg0: i32) -> (i32, i32, i32) {
    %c0_i32 = arith.constant 0 : i32
    %c0_i32_0 = arith.constant 0 : i32
    %c0_i32_1 = arith.constant 0 : i32
    return %arg0, %c0_i32, %c0_i32_0 : i32, i32, i32
  }
  func.func @transform_1(%arg0: i32) -> (i32, i32, i32) {
    %c0_i32 = arith.constant 0 : i32
    %c0_i32_0 = arith.constant 0 : i32
    %c0_i32_1 = arith.constant 0 : i32
    return %arg0, %c0_i32, %c0_i32_0 : i32, i32, i32
  }
  func.func @transform_2(%arg0: i32) -> (i32, i32, i32) {
    %c0_i32 = arith.constant 0 : i32
    %c0_i32_0 = arith.constant 0 : i32
    %c0_i32_1 = arith.constant 0 : i32
    return %arg0, %c0_i32, %c0_i32_0 : i32, i32, i32
  }
  func.func @transform_3(%arg0: i32) -> (i32, i32, i32) {
    %c0_i32 = arith.constant 0 : i32
    %c0_i32_0 = arith.constant 0 : i32
    %c0_i32_1 = arith.constant 0 : i32
    %c0_i32_2 = arith.constant 0 : i32
    return %c0_i32, %c0_i32_0, %c0_i32_1 : i32, i32, i32
  }
  func.func @transform_4(%arg0: i32) -> (i32, i32) {
    %c0_i32 = arith.constant 0 : i32
    %c0_i32_0 = arith.constant 0 : i32
    %c0_i32_1 = arith.constant 0 : i32
    return %c0_i32, %c0_i32_0 : i32, i32
  }
  func.func @transform_5(%arg0: i32) -> (i32, i32) {
    %c0_i32 = arith.constant 0 : i32
    %c0_i32_0 = arith.constant 0 : i32
    %c0_i32_1 = arith.constant 0 : i32
    return %c0_i32, %c0_i32_0 : i32, i32
  }
  func.func @transform_6(%arg0: i32) -> (i32, i32, i32) {
    %c0_i32 = arith.constant 0 : i32
    %c0_i32_0 = arith.constant 0 : i32
    %c0_i32_1 = arith.constant 0 : i32
    %c0_i32_2 = arith.constant 0 : i32
    return %c0_i32, %c0_i32_0, %c0_i32_1 : i32, i32, i32
  }
  func.func @transform_7(%arg0: i32) -> (i32, i32, i32) {
    %c0_i32 = arith.constant 0 : i32
    %c0_i32_0 = arith.constant 0 : i32
    %c0_i32_1 = arith.constant 0 : i32
    %c0_i32_2 = arith.constant 0 : i32
    return %c0_i32, %c0_i32_0, %c0_i32_1 : i32, i32, i32
  }
  func.func @transform_8(%arg0: i32) -> (i32, i32, i32) {
    %c0_i32 = arith.constant 0 : i32
    %c0_i32_0 = arith.constant 0 : i32
    %c0_i32_1 = arith.constant 0 : i32
    return %arg0, %c0_i32, %c0_i32_0 : i32, i32, i32
  }
}

</mosaic_0001>

<llo_original>
// kernel: tpu_custom_call.1
$region0: #{tpu_custom_call.1}
  #allocation0 [shape = 'u32[]', space=smem, size = 0x4, offset = 0x4, fixed_abs, tag = 'smem constant byte address 0x4 - core index']
  #allocation1 [shape = 'u32[144,128]{1,0:T(1,128)}', space=vmem, size = 0x12000, scoped, tag = 'internal scratch']
  %s0 = inlined_call_operand.vmem [shape: f32[2,16,64], index: 0, kind: input, shape index: {}]
  %s1 = inlined_call_operand.vmem [shape: f32[2,16,1], index: 1, kind: input, shape index: {}]
  %s2 = inlined_call_operand.vmem [shape: f32[2,16,64], index: 2, kind: input, shape index: {}]
  %s3 = inlined_call_operand.vmem [shape: f32[4,320,64], index: 3, kind: input, shape index: {}]
  %s4 = inlined_call_operand.vmem [shape: f32[64,256], index: 4, kind: input, shape index: {}]
  %s5 = inlined_call_operand.vmem [shape: f32[1,256], index: 5, kind: input, shape index: {}]
  %s6 = inlined_call_operand.vmem [shape: f32[4,32,64], index: 6, kind: input, shape index: {}]
  %s7 = inlined_call_operand.vmem [shape: f32[4,1,64], index: 7, kind: input, shape index: {}]
  %s8 = inlined_call_operand.hbm [shape: f32[2,16,64], index: 8, kind: output, shape index: {}]
  %s9 = sld [smem:[#allocation0]]
  $region65: #{tpu_custom_call.1} parent=0
    _
  %s11 = ssub.s32 1, %s9
  %s12 = scalar_select 0, %s11, %s9
  $region1: #{tpu_custom_call.1} parent=0
    #allocation2 [shape = 'u8[16384]{0}', space=vmem, size = 0x4000, scoped, tag = 'output window, operand 0']
    #allocation3 [shape = 's32[2]{0}', space=sflag, size = 0x8, scoped, tag = 'scoped memory for tpu_custom_call.1']
    %13 = vsyncpa [#allocation3], 0
    %s14 = scalar_lea.sflag [#allocation3], 1
    %15 = vsyncpa %s14, 0
    loop: start=0, step=1, limit=4
    $region2: #{tpu_custom_call.1} parent=1 // loop_pre_header
      _
    $region3: #{tpu_custom_call.1} parent=1 // loop_header
      %s17 = sphi 0, %s21
      %p18 = scmp.ge.s32.totalorder %s17, 4
      %s27 = sphi 0, %s29
      %s30 = sphi 0, %s27
      %s31 = sphi 0, %s30
      %s47 = sphi 0, %s31
      %s53 = sphi 0, %s55
      %s56 = sphi 0, %s53
      %s57 = sphi 0, %s56
      %s73 = sphi 0, %s57
      %s79 = sphi 0, %s81
      %s82 = sphi 0, %s79
      %s83 = sphi 0, %s82
      %s99 = sphi 0, %s83
      %s103 = sphi 0, %s103
      %s105 = sphi 0, %s103
      %s106 = sphi 0, %s105
      %s120 = sphi 0, %s106
      %s124 = sphi 0, %s124
      %s126 = sphi 0, %s124
      %s127 = sphi 0, %s126
      %s141 = sphi 0, %s127
      %s145 = sphi 0, %s145
      %s147 = sphi 0, %s145
      %s148 = sphi 0, %s147
      %s162 = sphi 0, %s148
      %s166 = sphi 0, %s166
      %s168 = sphi 0, %s166
      %s169 = sphi 0, %s168
      %s183 = sphi 0, %s169
      %s187 = sphi 0, %s187
      %s189 = sphi 0, %s187
      %s190 = sphi 0, %s189
      %s204 = sphi 0, %s190
      %s210 = sphi 0, %s212
      %s213 = sphi 0, %s210
      %s214 = sphi 0, %s213
      %s230 = sphi 0, %s214
    $region4: #{tpu_custom_call.1} parent=1 // loop_header_branch
      %20 = sbr.rel (%p18) target = $region8
    $region5: #{tpu_custom_call.1} parent=1 // loop_body
      %s22 = ssub.s32 %s17, 1
      %s23 = ssub.s32 %s17, 2
      %s24 = sadd.s32 %s17, 1
      %s25 = ssub.s32 %s17, %s24
      %p26 = scmp.eq.s32.totalorder %s25, 0
      %s28 = sadd.s32 %s27, 1
      %s29 = scalar_select %p26, %s27, %s28
      %p32 = pneg %p26
      %p33 = scmp.eq.s32.totalorder %s17, 1
      %p34 = por %p32, %p33
      %p35 = scmp.ne.s32.totalorder %s27, %s30
      %p36 = scmp.eq.s32.totalorder %s17, 0
      %p37 = por %p35, %p36
      %p38 = scmp.ne.s32.totalorder %s27, %s30
      %p39 = scmp.eq.s32.totalorder %s22, 1
      %p40 = por %p38, %p39
      %p41 = scmp.ne.s32.totalorder %s30, %s31
      %p42 = scmp.eq.s32.totalorder %s22, 0
      %p43 = por %p41, %p42
      %p44 = scmp.ne.s32.totalorder %s30, %s31
      %p45 = scmp.eq.s32.totalorder %s23, 1
      %p46 = por %p44, %p45
      %p48 = scmp.ne.s32.totalorder %s31, %s47
      %p49 = scmp.eq.s32.totalorder %s23, 0
      %p50 = por %p48, %p49
      %s51 = ssub.s32 %s17, %s24
      %p52 = scmp.eq.s32.totalorder %s51, 0
      %s54 = sadd.s32 %s53, 1
      %s55 = scalar_select %p52, %s53, %s54
      %p58 = pneg %p52
      %p59 = scmp.eq.s32.totalorder %s17, 1
      %p60 = por %p58, %p59
      %p61 = scmp.ne.s32.totalorder %s53, %s56
      %p62 = scmp.eq.s32.totalorder %s17, 0
      %p63 = por %p61, %p62
      %p64 = scmp.ne.s32.totalorder %s53, %s56
      %p65 = scmp.eq.s32.totalorder %s22, 1
      %p66 = por %p64, %p65
      %p67 = scmp.ne.s32.totalorder %s56, %s57
      %p68 = scmp.eq.s32.totalorder %s22, 0
      %p69 = por %p67, %p68
      %p70 = scmp.ne.s32.totalorder %s56, %s57
      %p71 = scmp.eq.s32.totalorder %s23, 1
      %p72 = por %p70, %p71
      %p74 = scmp.ne.s32.totalorder %s57, %s73
      %p75 = scmp.eq.s32.totalorder %s23, 0
      %p76 = por %p74, %p75
      %s77 = ssub.s32 %s17, %s24
      %p78 = scmp.eq.s32.totalorder %s77, 0
      %s80 = sadd.s32 %s79, 1
      %s81 = scalar_select %p78, %s79, %s80
      %p84 = pneg %p78
      %p85 = scmp.eq.s32.totalorder %s17, 1
      %p86 = por %p84, %p85
      %p87 = scmp.ne.s32.totalorder %s79, %s82
      %p88 = scmp.eq.s32.totalorder %s17, 0
      %p89 = por %p87, %p88
      %p90 = scmp.ne.s32.totalorder %s79, %s82
      %p91 = scmp.eq.s32.totalorder %s22, 1
      %p92 = por %p90, %p91
      %p93 = scmp.ne.s32.totalorder %s82, %s83
      %p94 = scmp.eq.s32.totalorder %s22, 0
      %p95 = por %p93, %p94
      %p96 = scmp.ne.s32.totalorder %s82, %s83
      %p97 = scmp.eq.s32.totalorder %s23, 1
      %p98 = por %p96, %p97
      %p100 = scmp.ne.s32.totalorder %s83, %s99
      %p101 = scmp.eq.s32.totalorder %s23, 0
      %p102 = por %p100, %p101
      %s104 = sadd.s32 %s103, 1
      %p107 = scmp.eq.s32.totalorder %s17, 1
      %p108 = scmp.ne.s32.totalorder %s103, %s105
      %p109 = scmp.eq.s32.totalorder %s17, 0
      %p110 = por %p108, %p109
      %p111 = scmp.ne.s32.totalorder %s103, %s105
      %p112 = scmp.eq.s32.totalorder %s22, 1
      %p113 = por %p111, %p112
      %p114 = scmp.ne.s32.totalorder %s105, %s106
      %p115 = scmp.eq.s32.totalorder %s22, 0
      %p116 = por %p114, %p115
      %p117 = scmp.ne.s32.totalorder %s105, %s106
      %p118 = scmp.eq.s32.totalorder %s23, 1
      %p119 = por %p117, %p118
      %p121 = scmp.ne.s32.totalorder %s106, %s120
      %p122 = scmp.eq.s32.totalorder %s23, 0
      %p123 = por %p121, %p122
      %s125 = sadd.s32 %s124, 1
      %p128 = scmp.eq.s32.totalorder %s17, 1
      %p129 = scmp.ne.s32.totalorder %s124, %s126
      %p130 = scmp.eq.s32.totalorder %s17, 0
      %p131 = por %p129, %p130
      %p132 = scmp.ne.s32.totalorder %s124, %s126
      %p133 = scmp.eq.s32.totalorder %s22, 1
      %p134 = por %p132, %p133
      %p135 = scmp.ne.s32.totalorder %s126, %s127
      %p136 = scmp.eq.s32.totalorder %s22, 0
      %p137 = por %p135, %p136
      %p138 = scmp.ne.s32.totalorder %s126, %s127
      %p139 = scmp.eq.s32.totalorder %s23, 1
      %p140 = por %p138, %p139
      %p142 = scmp.ne.s32.totalorder %s127, %s141
      %p143 = scmp.eq.s32.totalorder %s23, 0
      %p144 = por %p142, %p143
      %s146 = sadd.s32 %s145, 1
      %p149 = scmp.eq.s32.totalorder %s17, 1
      %p150 = scmp.ne.s32.totalorder %s145, %s147
      %p151 = scmp.eq.s32.totalorder %s17, 0
      %p152 = por %p150, %p151
      %p153 = scmp.ne.s32.totalorder %s145, %s147
      %p154 = scmp.eq.s32.totalorder %s22, 1
      %p155 = por %p153, %p154
      %p156 = scmp.ne.s32.totalorder %s147, %s148
      %p157 = scmp.eq.s32.totalorder %s22, 0
      %p158 = por %p156, %p157
      %p159 = scmp.ne.s32.totalorder %s147, %s148
      %p160 = scmp.eq.s32.totalorder %s23, 1
      %p161 = por %p159, %p160
      %p163 = scmp.ne.s32.totalorder %s148, %s162
      %p164 = scmp.eq.s32.totalorder %s23, 0
      %p165 = por %p163, %p164
      %s167 = sadd.s32 %s166, 1
      %p170 = scmp.eq.s32.totalorder %s17, 1
      %p171 = scmp.ne.s32.totalorder %s166, %s168
      %p172 = scmp.eq.s32.totalorder %s17, 0
      %p173 = por %p171, %p172
      %p174 = scmp.ne.s32.totalorder %s166, %s168
      %p175 = scmp.eq.s32.totalorder %s22, 1
      %p176 = por %p174, %p175
      %p177 = scmp.ne.s32.totalorder %s168, %s169
      %p178 = scmp.eq.s32.totalorder %s22, 0
      %p179 = por %p177, %p178
      %p180 = scmp.ne.s32.totalorder %s168, %s169
      %p181 = scmp.eq.s32.totalorder %s23, 1
      %p182 = por %p180, %p181
      %p184 = scmp.ne.s32.totalorder %s169, %s183
      %p185 = scmp.eq.s32.totalorder %s23, 0
      %p186 = por %p184, %p185
      %s188 = sadd.s32 %s187, 1
      %p191 = scmp.eq.s32.totalorder %s17, 1
      %p192 = scmp.ne.s32.totalorder %s187, %s189
      %p193 = scmp.eq.s32.totalorder %s17, 0
      %p194 = por %p192, %p193
      %p195 = scmp.ne.s32.totalorder %s187, %s189
      %p196 = scmp.eq.s32.totalorder %s22, 1
      %p197 = por %p195, %p196
      %p198 = scmp.ne.s32.totalorder %s189, %s190
      %p199 = scmp.eq.s32.totalorder %s22, 0
      %p200 = por %p198, %p199
      %p201 = scmp.ne.s32.totalorder %s189, %s190
      %p202 = scmp.eq.s32.totalorder %s23, 1
      %p203 = por %p201, %p202
      %p205 = scmp.ne.s32.totalorder %s190, %s204
      %p206 = scmp.eq.s32.totalorder %s23, 0
      %p207 = por %p205, %p206
      %s208 = ssub.s32 %s17, %s24
      %p209 = scmp.eq.s32.totalorder %s208, 0
      %s211 = sadd.s32 %s210, 1
      %s212 = scalar_select %p209, %s210, %s211
      %p215 = pneg %p209
      %p216 = scmp.eq.s32.totalorder %s17, 1
      %p217 = por %p215, %p216
      %p218 = scmp.ne.s32.totalorder %s210, %s213
      %p219 = scmp.eq.s32.totalorder %s17, 0
      %p220 = por %p218, %p219
      %p221 = scmp.ne.s32.totalorder %s210, %s213
      %p222 = scmp.eq.s32.totalorder %s22, 1
      %p223 = por %p221, %p222
      %p224 = scmp.ne.s32.totalorder %s213, %s214
      %p225 = scmp.eq.s32.totalorder %s22, 0
      %p226 = por %p224, %p225
      %p227 = scmp.ne.s32.totalorder %s213, %s214
      %p228 = scmp.eq.s32.totalorder %s23, 1
      %p229 = por %p227, %p228
      %p231 = scmp.ne.s32.totalorder %s214, %s230
      %p232 = scmp.eq.s32.totalorder %s23, 0
      %p233 = por %p231, %p232
      %p234 = scmp.le.s32.totalorder 1, %s17
      %p235 = scmp.lt.s32.totalorder %s17, 3
      %p236 = pnand %p234, %p235
      %p237 = pneg %p236
      // Predicated region
      $region9: #{tpu_custom_call.1} parent=5 // pred_check
        _
      $region10: #{tpu_custom_call.1} parent=5 // pred_check_branch
        %239 = sbr.rel (%p236) target = $region12
      $region11: #{tpu_custom_call.1} parent=5 // pred_region
        %s240 = ssub.s32 %s17, 1
        // Predicated region
        $region13: #{tpu_custom_call.1} parent=11 // pred_check
          %p241 = pneg %p116
        $region14: #{tpu_custom_call.1} parent=11 // pred_check_branch
          %243 = sbr.rel (%p241) target = $region16
        $region15: #{tpu_custom_call.1} parent=11 // pred_region
          _
        $region16: #{tpu_custom_call.1} parent=11 // pred_fallthru
          _
        // Predicated region
        $region17: #{tpu_custom_call.1} parent=11 // pred_check
          %p244 = pneg %p137
        $region18: #{tpu_custom_call.1} parent=11 // pred_check_branch
          %246 = sbr.rel (%p244) target = $region20
        $region19: #{tpu_custom_call.1} parent=11 // pred_region
          _
        $region20: #{tpu_custom_call.1} parent=11 // pred_fallthru
          _
        // Predicated region
        $region21: #{tpu_custom_call.1} parent=11 // pred_check
          %p247 = pneg %p158
        $region22: #{tpu_custom_call.1} parent=11 // pred_check_branch
          %249 = sbr.rel (%p247) target = $region24
        $region23: #{tpu_custom_call.1} parent=11 // pred_region
          _
        $region24: #{tpu_custom_call.1} parent=11 // pred_fallthru
          _
        // Predicated region
        $region25: #{tpu_custom_call.1} parent=11 // pred_check
          %p250 = pneg %p179
        $region26: #{tpu_custom_call.1} parent=11 // pred_check_branch
          %252 = sbr.rel (%p250) target = $region28
        $region27: #{tpu_custom_call.1} parent=11 // pred_region
          _
        $region28: #{tpu_custom_call.1} parent=11 // pred_fallthru
          _
        // Predicated region
        $region29: #{tpu_custom_call.1} parent=11 // pred_check
          %p253 = pneg %p200
        $region30: #{tpu_custom_call.1} parent=11 // pred_check_branch
          %255 = sbr.rel (%p253) target = $region32
        $region31: #{tpu_custom_call.1} parent=11 // pred_region
          _
        $region32: #{tpu_custom_call.1} parent=11 // pred_fallthru
          _
      $region12: #{tpu_custom_call.1} parent=5 // pred_fallthru
        _
      %p256 = scmp.lt.s32.totalorder %s17, 2
      // Predicated region
      $region33: #{tpu_custom_call.1} parent=5 // pred_check
        %p257 = pneg %p256
      $region34: #{tpu_custom_call.1} parent=5 // pred_check_branch
        %259 = sbr.rel (%p257) target = $region36
      $region35: #{tpu_custom_call.1} parent=5 // pred_region
        // Predicated region
        $region37: #{tpu_custom_call.1} parent=35 // pred_check
          %p260 = pneg %p37
        $region38: #{tpu_custom_call.1} parent=35 // pred_check_branch
          %262 = sbr.rel (%p260) target = $region40
        $region39: #{tpu_custom_call.1} parent=35 // pred_region
          %p263 = scmp.lt.s32.totalorder %s17, 1
          %s264 = scalar_select %p263, %s17, 1
          %s265 = smul.addr %s264, 2
          %s266 = smul.addr %s265, 8
          %s267 = scalar_lea.vmem %s0, %s266
        $region40: #{tpu_custom_call.1} parent=35 // pred_fallthru
          _
        // Predicated region
        $region41: #{tpu_custom_call.1} parent=35 // pred_check
          %p268 = pneg %p63
        $region42: #{tpu_custom_call.1} parent=35 // pred_check_branch
          %270 = sbr.rel (%p268) target = $region44
        $region43: #{tpu_custom_call.1} parent=35 // pred_region
          %p271 = scmp.lt.s32.totalorder %s17, 1
          %s272 = scalar_select %p271, %s17, 1
          %s273 = smul.addr %s272, 2
          %s274 = smul.addr %s273, 8
          %s275 = scalar_lea.vmem %s1, %s274
        $region44: #{tpu_custom_call.1} parent=35 // pred_fallthru
          _
        // Predicated region
        $region45: #{tpu_custom_call.1} parent=35 // pred_check
          %p276 = pneg %p89
        $region46: #{tpu_custom_call.1} parent=35 // pred_check_branch
          %278 = sbr.rel (%p276) target = $region48
        $region47: #{tpu_custom_call.1} parent=35 // pred_region
          %p279 = scmp.lt.s32.totalorder %s17, 1
          %s280 = scalar_select %p279, %s17, 1
          %s281 = smul.addr %s280, 2
          %s282 = smul.addr %s281, 8
          %s283 = scalar_lea.vmem %s2, %s282
        $region48: #{tpu_custom_call.1} parent=35 // pred_fallthru
          _
      $region36: #{tpu_custom_call.1} parent=5 // pred_fallthru
        _
      %p284 = scmp.le.s32.totalorder 1, %s17
      %p285 = scmp.lt.s32.totalorder %s17, 3
      %p286 = pnand %p284, %p285
      %p287 = pneg %p286
      // Predicated region
      $region49: #{tpu_custom_call.1} parent=5 // pred_check
        _
      $region50: #{tpu_custom_call.1} parent=5 // pred_check_branch
        %289 = sbr.rel (%p286) target = $region52
      $region51: #{tpu_custom_call.1} parent=5 // pred_region
        %s290 = ssub.s32 %s17, 1
        %p291 = scmp.lt.s32.totalorder %s22, 1
        %s292 = scalar_select %p291, %s22, 1
        %s293 = smul.addr %s292, 2
        %s294 = smul.addr %s293, 8
        %s295 = scalar_lea.vmem %s0, %s294
        %p296 = pneg %p43
        %p297 = pneg %p40
        %p298 = scmp.lt.s32.totalorder %s22, 1
        %s299 = scalar_select %p298, %s22, 1
        %s300 = smul.addr %s299, 2
        %s301 = smul.addr %s300, 8
        %s302 = scalar_lea.vmem %s1, %s301
        %p303 = pneg %p69
        %p304 = pneg %p66
        %p305 = scmp.lt.s32.totalorder %s22, 1
        %s306 = scalar_select %p305, %s22, 1
        %s307 = smul.addr %s306, 2
        %s308 = smul.addr %s307, 8
        %s309 = scalar_lea.vmem %s2, %s308
        %p310 = pneg %p95
        %p311 = pneg %p92
        %p312 = pneg %p116
        %p313 = pneg %p113
        %p314 = pneg %p137
        %p315 = pneg %p134
        %p316 = pneg %p158
        %p317 = pneg %p155
        %p318 = pneg %p179
        %p319 = pneg %p176
        %p320 = pneg %p200
        %p321 = pneg %p197
        %p322 = pneg %p226
        %p323 = pneg %p223
        %s324 = sand.u32 %s213, 1
        %s325 = scalar_lea.sflag [#allocation3], %s324
        %s326 = sand.u32 %s213, 1
        %s327 = smul.addr %s326, 16
        %s328 = scalar_lea.vmem [#allocation2], %s327
        %p329 = scmp.lt.s32.totalorder %s22, 1
        %s330 = scalar_select %p329, %s22, 1
        %s331 = smul.addr %s330, 2
        %s332 = smul.addr %s331, 8
        %s333 = scalar_lea.vmem %s0, %s332
        %p334 = scmp.lt.s32.totalorder %s22, 1
        %s335 = scalar_select %p334, %s22, 1
        %s336 = smul.addr %s335, 2
        %s337 = smul.addr %s336, 8
        %s338 = scalar_lea.vmem %s1, %s337
        %p339 = scmp.lt.s32.totalorder %s22, 1
        %s340 = scalar_select %p339, %s22, 1
        %s341 = smul.addr %s340, 2
        %s342 = smul.addr %s341, 8
        %s343 = scalar_lea.vmem %s2, %s342
        %v344 = vld [vmem:[%s333] sm:$0xff]
        %v345 = vld [vmem:[%s333 + $0x8] sm:$0xff]
        %v346 = vld [vmem:[%s343] sm:$0xff]
        %v347 = vld [vmem:[%s343 + $0x8] sm:$0xff]
        %v348 = vld [vmem:[%s338] sm:$0xff]
        %v349 = vld [vmem:[%s338 + $0x8] sm:$0xff]
        %351 = vset.pattern.permute.xlu0 0
        %352 = vperm.xlu0 %351, %v348
        %v353 = vpop.permute.xlu0 %352
        %356 = vset.pattern.permute.xlu0 0
        %357 = vperm.xlu0 %356, %v349
        %v358 = vpop.permute.xlu0 %357
        %v360 = vld [vmem:[%s4] sm:$0xff]
        %v361 = vld [vmem:[%s4 + $0x8] sm:$0xff]
        %v362 = vld [vmem:[%s4 + $0x10] sm:$0xff]
        %v363 = vld [vmem:[%s4 + $0x18] sm:$0xff]
        %v364 = vld [vmem:[%s4 + $0x20] sm:$0xff]
        %v365 = vld [vmem:[%s4 + $0x28] sm:$0xff]
        %v366 = vld [vmem:[%s4 + $0x30] sm:$0xff]
        %v367 = vld [vmem:[%s4 + $0x38] sm:$0xff]
        %v368 = vld [vmem:[%s4 + $0x40] sm:$0xff]
        %v369 = vld [vmem:[%s4 + $0x48] sm:$0xff]
        %v370 = vld [vmem:[%s4 + $0x50] sm:$0xff]
        %v371 = vld [vmem:[%s4 + $0x58] sm:$0xff]
        %v372 = vld [vmem:[%s4 + $0x60] sm:$0xff]
        %v373 = vld [vmem:[%s4 + $0x68] sm:$0xff]
        %v374 = vld [vmem:[%s4 + $0x70] sm:$0xff]
        %v375 = vld [vmem:[%s4 + $0x78] sm:$0xff]
        %v376 = vld [vmem:[%s5] sm:$0x3]
        %v378 = vlaneseq
        %v379 = vshrl.u32 %v378, 7
        %v380 = vsub.s32 0, %v379
        %v381 = vrot.slane %v376, %v380
        %v382 = vlaneseq
        %v383 = vshrl.u32 %v382, 7
        %v384 = vsub.s32 1, %v383
        %v385 = vrot.slane %v376, %v384
        %vm388 = vcmask 523264
        %v390 = vsel %vm388, %v346, 0
        %v393 = vsel %vm388, %v347, 0
        %395 = vmatprep.subr.mxu0 0.0
        %396 = vmatpush1.msra.mxu0 0.0
        %397 = vmatprep.subr.mxu0 0.0
        %398 = vmatpush1.msra.mxu0 0.0
        %399 = vmatprep.subr.mxu0 0.0
        %400 = vmatpush1.msra.mxu0 0.0
        %401 = vmatprep.subr.mxu0 0.0
        %402 = vmatpush1.msra.mxu0 0.0
        %403 = vmatprep.subr.mxu0 0.0
        %404 = vmatpush1.msra.mxu0 0.0
        %405 = vmatprep.subr.mxu0 0.0
        %406 = vmatpush1.msra.mxu0 0.0
        %407 = vmatprep.subr.mxu0 0.0
        %408 = vmatpush1.msra.mxu0 0.0
        %409 = vmatprep.subr.mxu0 0.0
        %410 = vmatpush1.msra.mxu0 0.0
        %411 = vmatprep.subr.mxu0 %v375
        %412 = vmatpush1.msra.mxu0 %v374
        %413 = vmatprep.subr.mxu0 %v373
        %414 = vmatpush1.msra.mxu0 %v372
        %415 = vmatprep.subr.mxu0 %v371
        %416 = vmatpush1.msra.mxu0 %v370
        %417 = vmatprep.subr.mxu0 %v369
        %418 = vmatpush1.msra.mxu0 %v368
        %419 = vmatprep.subr.mxu0 %v367
        %420 = vmatpush1.msra.mxu0 %v366
        %421 = vmatprep.subr.mxu0 %v365
        %422 = vmatpush1.msra.mxu0 %v364
        %423 = vmatprep.subr.mxu0 %v363
        %424 = vmatpush1.msra.mxu0 %v362
        %425 = vmatprep.subr.mxu0 %v361
        %426 = vmatpush1.msra.mxu0 %v360
        %427 = vmatprep.subr.mxu0 0.0
        %428 = vmatpush2.msra.mxu0 0.0
        %429 = vmatprep.subr.mxu0 0.0
        %430 = vmatpush2.msra.mxu0 0.0
        %431 = vmatprep.subr.mxu0 0.0
        %432 = vmatpush2.msra.mxu0 0.0
        %433 = vmatprep.subr.mxu0 0.0
        %434 = vmatpush2.msra.mxu0 0.0
        %435 = vmatprep.subr.mxu0 0.0
        %436 = vmatpush2.msra.mxu0 0.0
        %437 = vmatprep.subr.mxu0 0.0
        %438 = vmatpush2.msra.mxu0 0.0
        %439 = vmatprep.subr.mxu0 0.0
        %440 = vmatpush2.msra.mxu0 0.0
        %441 = vmatprep.subr.mxu0 0.0
        %442 = vmatpush2.msra.mxu0 0.0
        %443 = vmatprep.subr.mxu0 0.0
        %444 = vmatpush2.msra.mxu0 0.0
        %445 = vmatprep.subr.mxu0 0.0
        %446 = vmatpush2.msra.mxu0 0.0
        %447 = vmatprep.subr.mxu0 0.0
        %448 = vmatpush2.msra.mxu0 0.0
        %449 = vmatprep.subr.mxu0 0.0
        %450 = vmatpush2.msra.mxu0 0.0
        %451 = vmatprep.subr.mxu0 0.0
        %452 = vmatpush2.msra.mxu0 0.0
        %453 = vmatprep.subr.mxu0 0.0
        %454 = vmatpush2.msra.mxu0 0.0
        %455 = vmatprep.subr.mxu0 0.0
        %456 = vmatpush2.msra.mxu0 0.0
        %457 = vmatprep.subr.mxu0 0.0
        %458 = vmatpush2.msra.mxu0 0.0
        %459 = vmatprep.mubr.f32.mxu0 0.0
        %460 = vmatmul.mubr.f32.gmra.mxu0 %v390
        %v461 = vpop.f32.mrf.mxu0
        %v462 = vadd.f32 %v381, %v461
        %v463 = vpop.f32.mrf.mxu0
        %v464 = vadd.f32 %v385, %v463
        %465 = vmatprep.mubr.f32.mxu0 0.0
        %466 = vmatmul.mubr.f32.gmra.mxu0 %v393
        %v467 = vpop.f32.mrf.mxu0
        %v468 = vadd.f32 %v381, %v467
        %v469 = vpop.f32.mrf.mxu0
        %v470 = vadd.f32 %v385, %v469
        %471 = vdwg.mxu0
        %v472 = vlaneseq
        %v473 = vshrl.u32 %v472, 7
        %v474 = vadd.s32 %v473, 8
        %vm475 = vcmp.lt.s32.totalorder %v473, 1
        %vm476 = vcmp.lt.s32.totalorder %v474, 1
        %vm477 = vcmp.lt.s32.totalorder %v473, 2
        %vm478 = vcmp.lt.s32.totalorder %v474, 2
        %vm479 = vcmp.ge.s32.totalorder %v473, 15
        %vm480 = vcmp.ge.s32.totalorder %v474, 15
        %vm481 = vcmp.ge.s32.totalorder %v473, 14
        %vm482 = vcmp.ge.s32.totalorder %v474, 14
        %v483 = vlaneseq
        %v484 = vshrl.u32 %v483, 7
        %v485 = vsub.s32 0, %v484
        %v486 = vrot.slane %v344, %v485
        %v487 = vlaneseq
        %v488 = vshrl.u32 %v487, 7
        %v489 = vsub.s32 7, %v488
        %v490 = vrot.slane %v345, %v489
        %v491 = vrot.slane %v344, 6
        %v492 = vrot.slane %v345, 6
        %v493 = vsel %vm477, %v491, %v492
        %v494 = vsel %vm477, %v492, %v491
        %v495 = vsel %vm477, %v486, %v494
        %v496 = vsel %vm478, %v486, %v493
        %v497 = vrot.slane %v344, 7
        %v498 = vrot.slane %v345, 7
        %v499 = vsel %vm475, %v497, %v498
        %v500 = vsel %vm475, %v498, %v497
        %v501 = vsel %vm475, %v486, %v500
        %v502 = vsel %vm476, %v486, %v499
        %v503 = vrot.slane %v344, 1
        %v504 = vrot.slane %v345, 1
        %vm505 = vcmp.lt.s32.totalorder %v473, 7
        %v506 = vsel %vm505, %v503, %v504
        %v507 = vsel %vm505, %v504, %v503
        %v508 = vsel %vm479, %v490, %v506
        %v509 = vsel %vm480, %v490, %v507
        %v510 = vrot.slane %v344, 2
        %v511 = vrot.slane %v345, 2
        %vm512 = vcmp.lt.s32.totalorder %v473, 6
        %v513 = vsel %vm512, %v510, %v511
        %v514 = vsel %vm512, %v511, %v510
        %v515 = vsel %vm481, %v490, %v513
        %v516 = vsel %vm482, %v490, %v514
        %519 = vrot.lane.b32.xlu0 %v501, 64
        %v520 = vpop.permute.xlu0 %519
        %521 = vrot.lane.b32.xlu0 %v502, 64
        %v522 = vpop.permute.xlu0 %521
        %527 = vrot.lane.b32.xlu0 %v508, 64
        %v528 = vpop.permute.xlu0 %527
        %529 = vrot.lane.b32.xlu0 %v509, 64
        %v530 = vpop.permute.xlu0 %529
        %v533 = vsel %vm388, %v495, %v520
        %v534 = vsel %vm388, %v496, %v522
        %v535 = vsel %vm388, %v344, %v528
        %v536 = vsel %vm388, %v345, %v530
        %v537 = vld [vmem:[%s3] sm:$0xff]
        %v538 = vld [vmem:[%s3 + $0x8] sm:$0xff]
        %v539 = vld [vmem:[%s3 + $0x10] sm:$0xff]
        %v540 = vld [vmem:[%s3 + $0x18] sm:$0xff]
        %v541 = vld [vmem:[%s3 + $0x20] sm:$0xff]
        %v542 = vld [vmem:[%s3 + $0x28] sm:$0xff]
        %v543 = vld [vmem:[%s3 + $0x30] sm:$0xff]
        %v544 = vld [vmem:[%s3 + $0x38] sm:$0xff]
        %v545 = vld [vmem:[%s3 + $0x40] sm:$0xff]
        %v546 = vld [vmem:[%s3 + $0x48] sm:$0xff]
        %v547 = vld [vmem:[%s3 + $0x50] sm:$0xff]
        %v548 = vld [vmem:[%s3 + $0x58] sm:$0xff]
        %v549 = vld [vmem:[%s3 + $0x60] sm:$0xff]
        %v550 = vld [vmem:[%s3 + $0x68] sm:$0xff]
        %v551 = vld [vmem:[%s3 + $0x70] sm:$0xff]
        %v552 = vld [vmem:[%s3 + $0x78] sm:$0xff]
        %v553 = vld [vmem:[%s3 + $0x80] sm:$0xff]
        %v554 = vld [vmem:[%s3 + $0x88] sm:$0xff]
        %v555 = vld [vmem:[%s3 + $0x90] sm:$0xff]
        %v556 = vld [vmem:[%s3 + $0x98] sm:$0xff]
        %v557 = vld [vmem:[%s3 + $0xa0] sm:$0xff]
        %v558 = vld [vmem:[%s3 + $0xa8] sm:$0xff]
        %v559 = vld [vmem:[%s3 + $0xb0] sm:$0xff]
        %v560 = vld [vmem:[%s3 + $0xb8] sm:$0xff]
        %v561 = vld [vmem:[%s3 + $0xc0] sm:$0xff]
        %v562 = vld [vmem:[%s3 + $0xc8] sm:$0xff]
        %v563 = vld [vmem:[%s3 + $0xd0] sm:$0xff]
        %v564 = vld [vmem:[%s3 + $0xd8] sm:$0xff]
        %v565 = vld [vmem:[%s3 + $0xe0] sm:$0xff]
        %v566 = vld [vmem:[%s3 + $0xe8] sm:$0xff]
        %v567 = vld [vmem:[%s3 + $0xf0] sm:$0xff]
        %v568 = vld [vmem:[%s3 + $0xf8] sm:$0xff]
        %v569 = vld [vmem:[%s3 + $0x100] sm:$0xff]
        %v570 = vld [vmem:[%s3 + $0x108] sm:$0xff]
        %v571 = vld [vmem:[%s3 + $0x110] sm:$0xff]
        %v572 = vld [vmem:[%s3 + $0x118] sm:$0xff]
        %v573 = vld [vmem:[%s3 + $0x120] sm:$0xff]
        %v574 = vld [vmem:[%s3 + $0x128] sm:$0xff]
        %v575 = vld [vmem:[%s3 + $0x130] sm:$0xff]
        %v576 = vld [vmem:[%s3 + $0x138] sm:$0xff]
        %v578 = vsel %vm388, %v515, 0
        %v581 = vsel %vm388, %v516, 0
        %583 = vmatprep.subr.mxu0 0.0
        %584 = vmatpush1.msra.mxu0 %v552
        %585 = vmatprep.subr.mxu0 0.0
        %586 = vmatpush1.msra.mxu0 %v551
        %587 = vmatprep.subr.mxu0 0.0
        %588 = vmatpush1.msra.mxu0 %v550
        %589 = vmatprep.subr.mxu0 0.0
        %590 = vmatpush1.msra.mxu0 %v549
        %591 = vmatprep.subr.mxu0 0.0
        %592 = vmatpush1.msra.mxu0 %v548
        %593 = vmatprep.subr.mxu0 0.0
        %594 = vmatpush1.msra.mxu0 %v547
        %595 = vmatprep.subr.mxu0 0.0
        %596 = vmatpush1.msra.mxu0 %v546
        %597 = vmatprep.subr.mxu0 0.0
        %598 = vmatpush1.msra.mxu0 %v545
        %599 = vmatprep.subr.mxu0 0.0
        %600 = vmatpush1.msra.mxu0 %v544
        %601 = vmatprep.subr.mxu0 0.0
        %602 = vmatpush1.msra.mxu0 %v543
        %603 = vmatprep.subr.mxu0 0.0
        %604 = vmatpush1.msra.mxu0 %v542
        %605 = vmatprep.subr.mxu0 0.0
        %606 = vmatpush1.msra.mxu0 %v541
        %607 = vmatprep.subr.mxu0 0.0
        %608 = vmatpush1.msra.mxu0 %v540
        %609 = vmatprep.subr.mxu0 0.0
        %610 = vmatpush1.msra.mxu0 %v539
        %611 = vmatprep.subr.mxu0 0.0
        %612 = vmatpush1.msra.mxu0 %v538
        %613 = vmatprep.subr.mxu0 0.0
        %614 = vmatpush1.msra.mxu0 %v537
        %615 = vmatprep.subr.mxu0 0.0
        %616 = vmatpush2.msra.mxu0 %v568
        %617 = vmatprep.subr.mxu0 0.0
        %618 = vmatpush2.msra.mxu0 %v567
        %619 = vmatprep.subr.mxu0 0.0
        %620 = vmatpush2.msra.mxu0 %v566
        %621 = vmatprep.subr.mxu0 0.0
        %622 = vmatpush2.msra.mxu0 %v565
        %623 = vmatprep.subr.mxu0 0.0
        %624 = vmatpush2.msra.mxu0 %v564
        %625 = vmatprep.subr.mxu0 0.0
        %626 = vmatpush2.msra.mxu0 %v563
        %627 = vmatprep.subr.mxu0 0.0
        %628 = vmatpush2.msra.mxu0 %v562
        %629 = vmatprep.subr.mxu0 0.0
        %630 = vmatpush2.msra.mxu0 %v561
        %631 = vmatprep.subr.mxu0 0.0
        %632 = vmatpush2.msra.mxu0 %v560
        %633 = vmatprep.subr.mxu0 0.0
        %634 = vmatpush2.msra.mxu0 %v559
        %635 = vmatprep.subr.mxu0 0.0
        %636 = vmatpush2.msra.mxu0 %v558
        %637 = vmatprep.subr.mxu0 0.0
        %638 = vmatpush2.msra.mxu0 %v557
        %639 = vmatprep.subr.mxu0 0.0
        %640 = vmatpush2.msra.mxu0 %v556
        %641 = vmatprep.subr.mxu0 0.0
        %642 = vmatpush2.msra.mxu0 %v555
        %643 = vmatprep.subr.mxu0 0.0
        %644 = vmatpush2.msra.mxu0 %v554
        %645 = vmatprep.subr.mxu0 0.0
        %646 = vmatpush2.msra.mxu0 %v553
        %647 = vmatprep.mubr.f32.mxu0 %v535
        %648 = vmatmul.mubr.f32.gmra.mxu0 %v533
        %v649 = vpop.f32.mrf.mxu0
        %v650 = vadd.f32 %v462, %v649
        %v651 = vpop.f32.mrf.mxu0
        %652 = vmatprep.mubr.f32.mxu0 %v536
        %653 = vmatmul.mubr.f32.gmra.mxu0 %v534
        %v654 = vpop.f32.mrf.mxu0
        %v655 = vadd.f32 %v468, %v654
        %v656 = vpop.f32.mrf.mxu0
        %657 = vdwg.mxu0
        %658 = vmatprep.subr.mxu0 0.0
        %659 = vmatpush1.msra.mxu0 0.0
        %660 = vmatprep.subr.mxu0 0.0
        %661 = vmatpush1.msra.mxu0 0.0
        %662 = vmatprep.subr.mxu0 0.0
        %663 = vmatpush1.msra.mxu0 0.0
        %664 = vmatprep.subr.mxu0 0.0
        %665 = vmatpush1.msra.mxu0 0.0
        %666 = vmatprep.subr.mxu0 0.0
        %667 = vmatpush1.msra.mxu0 0.0
        %668 = vmatprep.subr.mxu0 0.0
        %669 = vmatpush1.msra.mxu0 0.0
        %670 = vmatprep.subr.mxu0 0.0
        %671 = vmatpush1.msra.mxu0 0.0
        %672 = vmatprep.subr.mxu0 0.0
        %673 = vmatpush1.msra.mxu0 0.0
        %674 = vmatprep.subr.mxu0 0.0
        %675 = vmatpush1.msra.mxu0 %v576
        %676 = vmatprep.subr.mxu0 0.0
        %677 = vmatpush1.msra.mxu0 %v575
        %678 = vmatprep.subr.mxu0 0.0
        %679 = vmatpush1.msra.mxu0 %v574
        %680 = vmatprep.subr.mxu0 0.0
        %681 = vmatpush1.msra.mxu0 %v573
        %682 = vmatprep.subr.mxu0 0.0
        %683 = vmatpush1.msra.mxu0 %v572
        %684 = vmatprep.subr.mxu0 0.0
        %685 = vmatpush1.msra.mxu0 %v571
        %686 = vmatprep.subr.mxu0 0.0
        %687 = vmatpush1.msra.mxu0 %v570
        %688 = vmatprep.subr.mxu0 0.0
        %689 = vmatpush1.msra.mxu0 %v569
        %690 = vmatprep.subr.mxu0 0.0
        %691 = vmatpush2.msra.mxu0 0.0
        %692 = vmatprep.subr.mxu0 0.0
        %693 = vmatpush2.msra.mxu0 0.0
        %694 = vmatprep.subr.mxu0 0.0
        %695 = vmatpush2.msra.mxu0 0.0
        %696 = vmatprep.subr.mxu0 0.0
        %697 = vmatpush2.msra.mxu0 0.0
        %698 = vmatprep.subr.mxu0 0.0
        %699 = vmatpush2.msra.mxu0 0.0
        %700 = vmatprep.subr.mxu0 0.0
        %701 = vmatpush2.msra.mxu0 0.0
        %702 = vmatprep.subr.mxu0 0.0
        %703 = vmatpush2.msra.mxu0 0.0
        %704 = vmatprep.subr.mxu0 0.0
        %705 = vmatpush2.msra.mxu0 0.0
        %706 = vmatprep.subr.mxu0 0.0
        %707 = vmatpush2.msra.mxu0 0.0
        %708 = vmatprep.subr.mxu0 0.0
        %709 = vmatpush2.msra.mxu0 0.0
        %710 = vmatprep.subr.mxu0 0.0
        %711 = vmatpush2.msra.mxu0 0.0
        %712 = vmatprep.subr.mxu0 0.0
        %713 = vmatpush2.msra.mxu0 0.0
        %714 = vmatprep.subr.mxu0 0.0
        %715 = vmatpush2.msra.mxu0 0.0
        %716 = vmatprep.subr.mxu0 0.0
        %717 = vmatpush2.msra.mxu0 0.0
        %718 = vmatprep.subr.mxu0 0.0
        %719 = vmatpush2.msra.mxu0 0.0
        %720 = vmatprep.subr.mxu0 0.0
        %721 = vmatpush2.msra.mxu0 0.0
        %722 = vmatprep.mubr.f32.mxu0 0.0
        %723 = vmatmul.mubr.f32.gmra.mxu0 %v578
        %v724 = vpop.f32.mrf.mxu0
        %v725 = vadd.f32 %v650, %v724
        %v726 = vpop.f32.mrf.mxu0
        %727 = vmatprep.mubr.f32.mxu0 0.0
        %728 = vmatmul.mubr.f32.gmra.mxu0 %v581
        %v729 = vpop.f32.mrf.mxu0
        %v730 = vadd.f32 %v655, %v729
        %v731 = vpop.f32.mrf.mxu0
        %732 = vdwg.mxu0
        %v733 = vtanh.pop %v725
        %v734 = vtanh.pop %v730
        %v735 = vxor.u32 %v725, 2147483648
        %v736 = vxor.u32 %v730, 2147483648
        %v737 = vmul.f32 %v735, 1.442695
        %v738 = vpow.pop %v737
        %v739 = vmul.f32 %v736, 1.442695
        %v740 = vpow.pop %v739
        %v741 = vadd.f32 %v738, 1.0
        %v742 = vadd.f32 %v740, 1.0
        %v743 = vrcp.pop %v741
        %v744 = vmul.f32 1.0, %v743
        %v745 = vrcp.pop %v742
        %v746 = vmul.f32 1.0, %v745
        %749 = vrot.lane.b32.xlu0 %v744, 96
        %v750 = vpop.permute.xlu0 %749
        %751 = vrot.lane.b32.xlu0 %v746, 96
        %v752 = vpop.permute.xlu0 %751
        %v755 = vmul.f32 %v733, %v750
        %v756 = vmul.f32 %v734, %v752
        %v757 = vld [vmem:[%s6] sm:$0xff]
        %v758 = vld [vmem:[%s6 + $0x8] sm:$0xff]
        %v759 = vld [vmem:[%s6 + $0x10] sm:$0xff]
        %v760 = vld [vmem:[%s6 + $0x18] sm:$0xff]
        %v761 = vld [vmem:[%s7] sm:$0x1]
        %v763 = vlaneseq
        %v764 = vshrl.u32 %v763, 7
        %v765 = vsub.s32 0, %v764
        %v766 = vrot.slane %v761, %v765
        %vm768 = vcmask 261120
        %v770 = vsel %vm768, %v755, 0
        %v773 = vsel %vm768, %v756, 0
        %775 = vmatprep.subr.mxu0 0.0
        %776 = vmatpush1.msra.mxu0 0.0
        %777 = vmatprep.subr.mxu0 0.0
        %778 = vmatpush1.msra.mxu0 0.0
        %779 = vmatprep.subr.mxu0 0.0
        %780 = vmatpush1.msra.mxu0 0.0
        %781 = vmatprep.subr.mxu0 0.0
        %782 = vmatpush1.msra.mxu0 0.0
        %783 = vmatprep.subr.mxu0 0.0
        %784 = vmatpush1.msra.mxu0 0.0
        %785 = vmatprep.subr.mxu0 0.0
        %786 = vmatpush1.msra.mxu0 0.0
        %787 = vmatprep.subr.mxu0 0.0
        %788 = vmatpush1.msra.mxu0 0.0
        %789 = vmatprep.subr.mxu0 0.0
        %790 = vmatpush1.msra.mxu0 0.0
        %791 = vmatprep.subr.mxu0 0.0
        %792 = vmatpush1.msra.mxu0 0.0
        %793 = vmatprep.subr.mxu0 0.0
        %794 = vmatpush1.msra.mxu0 0.0
        %795 = vmatprep.subr.mxu0 0.0
        %796 = vmatpush1.msra.mxu0 0.0
        %797 = vmatprep.subr.mxu0 0.0
        %798 = vmatpush1.msra.mxu0 0.0
        %799 = vmatprep.subr.mxu0 0.0
        %800 = vmatpush1.msra.mxu0 %v760
        %801 = vmatprep.subr.mxu0 0.0
        %802 = vmatpush1.msra.mxu0 %v759
        %803 = vmatprep.subr.mxu0 0.0
        %804 = vmatpush1.msra.mxu0 %v758
        %805 = vmatprep.subr.mxu0 0.0
        %806 = vmatpush1.msra.mxu0 %v757
        %807 = vmatprep.subr.mxu0 0.0
        %808 = vmatpush2.msra.mxu0 0.0
        %809 = vmatprep.subr.mxu0 0.0
        %810 = vmatpush2.msra.mxu0 0.0
        %811 = vmatprep.subr.mxu0 0.0
        %812 = vmatpush2.msra.mxu0 0.0
        %813 = vmatprep.subr.mxu0 0.0
        %814 = vmatpush2.msra.mxu0 0.0
        %815 = vmatprep.subr.mxu0 0.0
        %816 = vmatpush2.msra.mxu0 0.0
        %817 = vmatprep.subr.mxu0 0.0
        %818 = vmatpush2.msra.mxu0 0.0
        %819 = vmatprep.subr.mxu0 0.0
        %820 = vmatpush2.msra.mxu0 0.0
        %821 = vmatprep.subr.mxu0 0.0
        %822 = vmatpush2.msra.mxu0 0.0
        %823 = vmatprep.subr.mxu0 0.0
        %824 = vmatpush2.msra.mxu0 0.0
        %825 = vmatprep.subr.mxu0 0.0
        %826 = vmatpush2.msra.mxu0 0.0
        %827 = vmatprep.subr.mxu0 0.0
        %828 = vmatpush2.msra.mxu0 0.0
        %829 = vmatprep.subr.mxu0 0.0
        %830 = vmatpush2.msra.mxu0 0.0
        %831 = vmatprep.subr.mxu0 0.0
        %832 = vmatpush2.msra.mxu0 0.0
        %833 = vmatprep.subr.mxu0 0.0
        %834 = vmatpush2.msra.mxu0 0.0
        %835 = vmatprep.subr.mxu0 0.0
        %836 = vmatpush2.msra.mxu0 0.0
        %837 = vmatprep.subr.mxu0 0.0
        %838 = vmatpush2.msra.mxu0 0.0
        %839 = vmatprep.mubr.f32.mxu0 0.0
        %840 = vmatmul.mubr.f32.gmra.mxu0 %v770
        %v841 = vpop.f32.mrf.mxu0
        %v842 = vadd.f32 %v766, %v841
        %v843 = vpop.f32.mrf.mxu0
        %844 = vmatprep.mubr.f32.mxu0 0.0
        %845 = vmatmul.mubr.f32.gmra.mxu0 %v773
        %v846 = vpop.f32.mrf.mxu0
        %v847 = vadd.f32 %v766, %v846
        %v848 = vpop.f32.mrf.mxu0
        %849 = vdwg.mxu0
        %v850 = vadd.f32 %v842, %v344
        %v851 = vadd.f32 %v847, %v345
        %v852 = vmul.f32 %v850, %v353
        %v853 = vmul.f32 %v851, %v358
        %v854 = vlaneseq
        %v855 = vshrl.u32 %v854, 7
        %v856 = vsub.s32 0, %v855
        %v857 = vrot.slane %v852, %v856
        %v858 = vlaneseq
        %v859 = vshrl.u32 %v858, 7
        %v860 = vsub.s32 7, %v859
        %v861 = vrot.slane %v853, %v860
        %v862 = vrot.slane %v852, 6
        %v863 = vrot.slane %v853, 6
        %v864 = vsel %vm477, %v862, %v863
        %v865 = vsel %vm477, %v863, %v862
        %v866 = vsel %vm477, %v857, %v865
        %v867 = vsel %vm478, %v857, %v864
        %v868 = vrot.slane %v852, 7
        %v869 = vrot.slane %v853, 7
        %v870 = vsel %vm475, %v868, %v869
        %v871 = vsel %vm475, %v869, %v868
        %v872 = vsel %vm475, %v857, %v871
        %v873 = vsel %vm476, %v857, %v870
        %v874 = vrot.slane %v852, 1
        %v875 = vrot.slane %v853, 1
        %v876 = vsel %vm505, %v874, %v875
        %v877 = vsel %vm505, %v875, %v874
        %v878 = vsel %vm479, %v861, %v876
        %v879 = vsel %vm480, %v861, %v877
        %v880 = vrot.slane %v852, 2
        %v881 = vrot.slane %v853, 2
        %v882 = vsel %vm512, %v880, %v881
        %v883 = vsel %vm512, %v881, %v880
        %v884 = vsel %vm481, %v861, %v882
        %v885 = vsel %vm482, %v861, %v883
        %888 = vrot.lane.b32.xlu0 %v872, 64
        %v889 = vpop.permute.xlu0 %888
        %890 = vrot.lane.b32.xlu0 %v873, 64
        %v891 = vpop.permute.xlu0 %890
        %896 = vrot.lane.b32.xlu0 %v878, 64
        %v897 = vpop.permute.xlu0 %896
        %898 = vrot.lane.b32.xlu0 %v879, 64
        %v899 = vpop.permute.xlu0 %898
        %v902 = vsel %vm388, %v866, %v889
        %v903 = vsel %vm388, %v867, %v891
        %v904 = vsel %vm388, %v852, %v897
        %v905 = vsel %vm388, %v853, %v899
        %s906 = scalar_lea.vmem %s3, 320
        %v907 = vld [vmem:[%s906] sm:$0xff]
        %v908 = vld [vmem:[%s906 + $0x8] sm:$0xff]
        %v909 = vld [vmem:[%s906 + $0x10] sm:$0xff]
        %v910 = vld [vmem:[%s906 + $0x18] sm:$0xff]
        %v911 = vld [vmem:[%s906 + $0x20] sm:$0xff]
        %v912 = vld [vmem:[%s906 + $0x28] sm:$0xff]
        %v913 = vld [vmem:[%s906 + $0x30] sm:$0xff]
        %v914 = vld [vmem:[%s906 + $0x38] sm:$0xff]
        %v915 = vld [vmem:[%s906 + $0x40] sm:$0xff]
        %v916 = vld [vmem:[%s906 + $0x48] sm:$0xff]
        %v917 = vld [vmem:[%s906 + $0x50] sm:$0xff]
        %v918 = vld [vmem:[%s906 + $0x58] sm:$0xff]
        %v919 = vld [vmem:[%s906 + $0x60] sm:$0xff]
        %v920 = vld [vmem:[%s906 + $0x68] sm:$0xff]
        %v921 = vld [vmem:[%s906 + $0x70] sm:$0xff]
        %v922 = vld [vmem:[%s906 + $0x78] sm:$0xff]
        %v923 = vld [vmem:[%s906 + $0x80] sm:$0xff]
        %v924 = vld [vmem:[%s906 + $0x88] sm:$0xff]
        %v925 = vld [vmem:[%s906 + $0x90] sm:$0xff]
        %v926 = vld [vmem:[%s906 + $0x98] sm:$0xff]
        %v927 = vld [vmem:[%s906 + $0xa0] sm:$0xff]
        %v928 = vld [vmem:[%s906 + $0xa8] sm:$0xff]
        %v929 = vld [vmem:[%s906 + $0xb0] sm:$0xff]
        %v930 = vld [vmem:[%s906 + $0xb8] sm:$0xff]
        %v931 = vld [vmem:[%s906 + $0xc0] sm:$0xff]
        %v932 = vld [vmem:[%s906 + $0xc8] sm:$0xff]
        %v933 = vld [vmem:[%s906 + $0xd0] sm:$0xff]
        %v934 = vld [vmem:[%s906 + $0xd8] sm:$0xff]
        %v935 = vld [vmem:[%s906 + $0xe0] sm:$0xff]
        %v936 = vld [vmem:[%s906 + $0xe8] sm:$0xff]
        %v937 = vld [vmem:[%s906 + $0xf0] sm:$0xff]
        %v938 = vld [vmem:[%s906 + $0xf8] sm:$0xff]
        %v939 = vld [vmem:[%s906 + $0x100] sm:$0xff]
        %v940 = vld [vmem:[%s906 + $0x108] sm:$0xff]
        %v941 = vld [vmem:[%s906 + $0x110] sm:$0xff]
        %v942 = vld [vmem:[%s906 + $0x118] sm:$0xff]
        %v943 = vld [vmem:[%s906 + $0x120] sm:$0xff]
        %v944 = vld [vmem:[%s906 + $0x128] sm:$0xff]
        %v945 = vld [vmem:[%s906 + $0x130] sm:$0xff]
        %v946 = vld [vmem:[%s906 + $0x138] sm:$0xff]
        %949 = vrot.lane.b32.xlu0 %v462, 64
        %v950 = vpop.permute.xlu0 %949
        %951 = vrot.lane.b32.xlu0 %v468, 64
        %v952 = vpop.permute.xlu0 %951
        %v956 = vsel %vm388, %v884, 0
        %v959 = vsel %vm388, %v885, 0
        %961 = vmatprep.subr.mxu0 0.0
        %962 = vmatpush1.msra.mxu0 %v922
        %963 = vmatprep.subr.mxu0 0.0
        %964 = vmatpush1.msra.mxu0 %v921
        %965 = vmatprep.subr.mxu0 0.0
        %966 = vmatpush1.msra.mxu0 %v920
        %967 = vmatprep.subr.mxu0 0.0
        %968 = vmatpush1.msra.mxu0 %v919
        %969 = vmatprep.subr.mxu0 0.0
        %970 = vmatpush1.msra.mxu0 %v918
        %971 = vmatprep.subr.mxu0 0.0
        %972 = vmatpush1.msra.mxu0 %v917
        %973 = vmatprep.subr.mxu0 0.0
        %974 = vmatpush1.msra.mxu0 %v916
        %975 = vmatprep.subr.mxu0 0.0
        %976 = vmatpush1.msra.mxu0 %v915
        %977 = vmatprep.subr.mxu0 0.0
        %978 = vmatpush1.msra.mxu0 %v914
        %979 = vmatprep.subr.mxu0 0.0
        %980 = vmatpush1.msra.mxu0 %v913
        %981 = vmatprep.subr.mxu0 0.0
        %982 = vmatpush1.msra.mxu0 %v912
        %983 = vmatprep.subr.mxu0 0.0
        %984 = vmatpush1.msra.mxu0 %v911
        %985 = vmatprep.subr.mxu0 0.0
        %986 = vmatpush1.msra.mxu0 %v910
        %987 = vmatprep.subr.mxu0 0.0
        %988 = vmatpush1.msra.mxu0 %v909
        %989 = vmatprep.subr.mxu0 0.0
        %990 = vmatpush1.msra.mxu0 %v908
        %991 = vmatprep.subr.mxu0 0.0
        %992 = vmatpush1.msra.mxu0 %v907
        %993 = vmatprep.subr.mxu0 0.0
        %994 = vmatpush2.msra.mxu0 %v938
        %995 = vmatprep.subr.mxu0 0.0
        %996 = vmatpush2.msra.mxu0 %v937
        %997 = vmatprep.subr.mxu0 0.0
        %998 = vmatpush2.msra.mxu0 %v936
        %999 = vmatprep.subr.mxu0 0.0
        %1000 = vmatpush2.msra.mxu0 %v935
        %1001 = vmatprep.subr.mxu0 0.0
        %1002 = vmatpush2.msra.mxu0 %v934
        %1003 = vmatprep.subr.mxu0 0.0
        %1004 = vmatpush2.msra.mxu0 %v933
        %1005 = vmatprep.subr.mxu0 0.0
        %1006 = vmatpush2.msra.mxu0 %v932
        %1007 = vmatprep.subr.mxu0 0.0
        %1008 = vmatpush2.msra.mxu0 %v931
        %1009 = vmatprep.subr.mxu0 0.0
        %1010 = vmatpush2.msra.mxu0 %v930
        %1011 = vmatprep.subr.mxu0 0.0
        %1012 = vmatpush2.msra.mxu0 %v929
        %1013 = vmatprep.subr.mxu0 0.0
        %1014 = vmatpush2.msra.mxu0 %v928
        %1015 = vmatprep.subr.mxu0 0.0
        %1016 = vmatpush2.msra.mxu0 %v927
        %1017 = vmatprep.subr.mxu0 0.0
        %1018 = vmatpush2.msra.mxu0 %v926
        %1019 = vmatprep.subr.mxu0 0.0
        %1020 = vmatpush2.msra.mxu0 %v925
        %1021 = vmatprep.subr.mxu0 0.0
        %1022 = vmatpush2.msra.mxu0 %v924
        %1023 = vmatprep.subr.mxu0 0.0
        %1024 = vmatpush2.msra.mxu0 %v923
        %1025 = vmatprep.mubr.f32.mxu0 %v904
        %1026 = vmatmul.mubr.f32.gmra.mxu0 %v902
        %v1027 = vpop.f32.mrf.mxu0
        %v1028 = vadd.f32 %v950, %v1027
        %v1029 = vpop.f32.mrf.mxu0
        %1030 = vmatprep.mubr.f32.mxu0 %v905
        %1031 = vmatmul.mubr.f32.gmra.mxu0 %v903
        %v1032 = vpop.f32.mrf.mxu0
        %v1033 = vadd.f32 %v952, %v1032
        %v1034 = vpop.f32.mrf.mxu0
        %1035 = vdwg.mxu0
        %1036 = vmatprep.subr.mxu0 0.0
        %1037 = vmatpush1.msra.mxu0 0.0
        %1038 = vmatprep.subr.mxu0 0.0
        %1039 = vmatpush1.msra.mxu0 0.0
        %1040 = vmatprep.subr.mxu0 0.0
        %1041 = vmatpush1.msra.mxu0 0.0
        %1042 = vmatprep.subr.mxu0 0.0
        %1043 = vmatpush1.msra.mxu0 0.0
        %1044 = vmatprep.subr.mxu0 0.0
        %1045 = vmatpush1.msra.mxu0 0.0
        %1046 = vmatprep.subr.mxu0 0.0
        %1047 = vmatpush1.msra.mxu0 0.0
        %1048 = vmatprep.subr.mxu0 0.0
        %1049 = vmatpush1.msra.mxu0 0.0
        %1050 = vmatprep.subr.mxu0 0.0
        %1051 = vmatpush1.msra.mxu0 0.0
        %1052 = vmatprep.subr.mxu0 0.0
        %1053 = vmatpush1.msra.mxu0 %v946
        %1054 = vmatprep.subr.mxu0 0.0
        %1055 = vmatpush1.msra.mxu0 %v945
        %1056 = vmatprep.subr.mxu0 0.0
        %1057 = vmatpush1.msra.mxu0 %v944
        %1058 = vmatprep.subr.mxu0 0.0
        %1059 = vmatpush1.msra.mxu0 %v943
        %1060 = vmatprep.subr.mxu0 0.0
        %1061 = vmatpush1.msra.mxu0 %v942
        %1062 = vmatprep.subr.mxu0 0.0
        %1063 = vmatpush1.msra.mxu0 %v941
        %1064 = vmatprep.subr.mxu0 0.0
        %1065 = vmatpush1.msra.mxu0 %v940
        %1066 = vmatprep.subr.mxu0 0.0
        %1067 = vmatpush1.msra.mxu0 %v939
        %1068 = vmatprep.subr.mxu0 0.0
        %1069 = vmatpush2.msra.mxu0 0.0
        %1070 = vmatprep.subr.mxu0 0.0
        %1071 = vmatpush2.msra.mxu0 0.0
        %1072 = vmatprep.subr.mxu0 0.0
        %1073 = vmatpush2.msra.mxu0 0.0
        %1074 = vmatprep.subr.mxu0 0.0
        %1075 = vmatpush2.msra.mxu0 0.0
        %1076 = vmatprep.subr.mxu0 0.0
        %1077 = vmatpush2.msra.mxu0 0.0
        %1078 = vmatprep.subr.mxu0 0.0
        %1079 = vmatpush2.msra.mxu0 0.0
        %1080 = vmatprep.subr.mxu0 0.0
        %1081 = vmatpush2.msra.mxu0 0.0
        %1082 = vmatprep.subr.mxu0 0.0
        %1083 = vmatpush2.msra.mxu0 0.0
        %1084 = vmatprep.subr.mxu0 0.0
        %1085 = vmatpush2.msra.mxu0 0.0
        %1086 = vmatprep.subr.mxu0 0.0
        %1087 = vmatpush2.msra.mxu0 0.0
        %1088 = vmatprep.subr.mxu0 0.0
        %1089 = vmatpush2.msra.mxu0 0.0
        %1090 = vmatprep.subr.mxu0 0.0
        %1091 = vmatpush2.msra.mxu0 0.0
        %1092 = vmatprep.subr.mxu0 0.0
        %1093 = vmatpush2.msra.mxu0 0.0
        %1094 = vmatprep.subr.mxu0 0.0
        %1095 = vmatpush2.msra.mxu0 0.0
        %1096 = vmatprep.subr.mxu0 0.0
        %1097 = vmatpush2.msra.mxu0 0.0
        %1098 = vmatprep.subr.mxu0 0.0
        %1099 = vmatpush2.msra.mxu0 0.0
        %1100 = vmatprep.mubr.f32.mxu0 0.0
        %1101 = vmatmul.mubr.f32.gmra.mxu0 %v956
        %v1102 = vpop.f32.mrf.mxu0
        %v1103 = vadd.f32 %v1028, %v1102
        %v1104 = vpop.f32.mrf.mxu0
        %1105 = vmatprep.mubr.f32.mxu0 0.0
        %1106 = vmatmul.mubr.f32.gmra.mxu0 %v959
        %v1107 = vpop.f32.mrf.mxu0
        %v1108 = vadd.f32 %v1033, %v1107
        %v1109 = vpop.f32.mrf.mxu0
        %1110 = vdwg.mxu0
        %v1111 = vtanh.pop %v1103
        %v1112 = vtanh.pop %v1108
        %v1113 = vxor.u32 %v1103, 2147483648
        %v1114 = vxor.u32 %v1108, 2147483648
        %v1115 = vmul.f32 %v1113, 1.442695
        %v1116 = vpow.pop %v1115
        %v1117 = vmul.f32 %v1114, 1.442695
        %v1118 = vpow.pop %v1117
        %v1119 = vadd.f32 %v1116, 1.0
        %v1120 = vadd.f32 %v1118, 1.0
        %v1121 = vrcp.pop %v1119
        %v1122 = vmul.f32 1.0, %v1121
        %v1123 = vrcp.pop %v1120
        %v1124 = vmul.f32 1.0, %v1123
        %1127 = vrot.lane.b32.xlu0 %v1122, 96
        %v1128 = vpop.permute.xlu0 %1127
        %1129 = vrot.lane.b32.xlu0 %v1124, 96
        %v1130 = vpop.permute.xlu0 %1129
        %v1133 = vmul.f32 %v1111, %v1128
        %v1134 = vmul.f32 %v1112, %v1130
        %s1135 = scalar_lea.vmem %s6, 32
        %v1136 = vld [vmem:[%s1135] sm:$0xff]
        %v1137 = vld [vmem:[%s1135 + $0x8] sm:$0xff]
        %v1138 = vld [vmem:[%s1135 + $0x10] sm:$0xff]
        %v1139 = vld [vmem:[%s1135 + $0x18] sm:$0xff]
        %s1140 = scalar_lea.vmem %s7, 1
        %v1141 = vld [vmem:[%s1140] sm:$0x1]
        %v1143 = vlaneseq
        %v1144 = vshrl.u32 %v1143, 7
        %v1145 = vsub.s32 0, %v1144
        %v1146 = vrot.slane %v1141, %v1145
        %v1149 = vsel %vm768, %v1133, 0
        %v1152 = vsel %vm768, %v1134, 0
        %1154 = vmatprep.subr.mxu0 0.0
        %1155 = vmatpush1.msra.mxu0 0.0
        %1156 = vmatprep.subr.mxu0 0.0
        %1157 = vmatpush1.msra.mxu0 0.0
        %1158 = vmatprep.subr.mxu0 0.0
        %1159 = vmatpush1.msra.mxu0 0.0
        %1160 = vmatprep.subr.mxu0 0.0
        %1161 = vmatpush1.msra.mxu0 0.0
        %1162 = vmatprep.subr.mxu0 0.0
        %1163 = vmatpush1.msra.mxu0 0.0
        %1164 = vmatprep.subr.mxu0 0.0
        %1165 = vmatpush1.msra.mxu0 0.0
        %1166 = vmatprep.subr.mxu0 0.0
        %1167 = vmatpush1.msra.mxu0 0.0
        %1168 = vmatprep.subr.mxu0 0.0
        %1169 = vmatpush1.msra.mxu0 0.0
        %1170 = vmatprep.subr.mxu0 0.0
        %1171 = vmatpush1.msra.mxu0 0.0
        %1172 = vmatprep.subr.mxu0 0.0
        %1173 = vmatpush1.msra.mxu0 0.0
        %1174 = vmatprep.subr.mxu0 0.0
        %1175 = vmatpush1.msra.mxu0 0.0
        %1176 = vmatprep.subr.mxu0 0.0
        %1177 = vmatpush1.msra.mxu0 0.0
        %1178 = vmatprep.subr.mxu0 0.0
        %1179 = vmatpush1.msra.mxu0 %v1139
        %1180 = vmatprep.subr.mxu0 0.0
        %1181 = vmatpush1.msra.mxu0 %v1138
        %1182 = vmatprep.subr.mxu0 0.0
        %1183 = vmatpush1.msra.mxu0 %v1137
        %1184 = vmatprep.subr.mxu0 0.0
        %1185 = vmatpush1.msra.mxu0 %v1136
        %1186 = vmatprep.subr.mxu0 0.0
        %1187 = vmatpush2.msra.mxu0 0.0
        %1188 = vmatprep.subr.mxu0 0.0
        %1189 = vmatpush2.msra.mxu0 0.0
        %1190 = vmatprep.subr.mxu0 0.0
        %1191 = vmatpush2.msra.mxu0 0.0
        %1192 = vmatprep.subr.mxu0 0.0
        %1193 = vmatpush2.msra.mxu0 0.0
        %1194 = vmatprep.subr.mxu0 0.0
        %1195 = vmatpush2.msra.mxu0 0.0
        %1196 = vmatprep.subr.mxu0 0.0
        %1197 = vmatpush2.msra.mxu0 0.0
        %1198 = vmatprep.subr.mxu0 0.0
        %1199 = vmatpush2.msra.mxu0 0.0
        %1200 = vmatprep.subr.mxu0 0.0
        %1201 = vmatpush2.msra.mxu0 0.0
        %1202 = vmatprep.subr.mxu0 0.0
        %1203 = vmatpush2.msra.mxu0 0.0
        %1204 = vmatprep.subr.mxu0 0.0
        %1205 = vmatpush2.msra.mxu0 0.0
        %1206 = vmatprep.subr.mxu0 0.0
        %1207 = vmatpush2.msra.mxu0 0.0
        %1208 = vmatprep.subr.mxu0 0.0
        %1209 = vmatpush2.msra.mxu0 0.0
        %1210 = vmatprep.subr.mxu0 0.0
        %1211 = vmatpush2.msra.mxu0 0.0
        %1212 = vmatprep.subr.mxu0 0.0
        %1213 = vmatpush2.msra.mxu0 0.0
        %1214 = vmatprep.subr.mxu0 0.0
        %1215 = vmatpush2.msra.mxu0 0.0
        %1216 = vmatprep.subr.mxu0 0.0
        %1217 = vmatpush2.msra.mxu0 0.0
        %1218 = vmatprep.mubr.f32.mxu0 0.0
        %1219 = vmatmul.mubr.f32.gmra.mxu0 %v1149
        %v1220 = vpop.f32.mrf.mxu0
        %v1221 = vadd.f32 %v1146, %v1220
        %v1222 = vpop.f32.mrf.mxu0
        %1223 = vmatprep.mubr.f32.mxu0 0.0
        %1224 = vmatmul.mubr.f32.gmra.mxu0 %v1152
        %v1225 = vpop.f32.mrf.mxu0
        %v1226 = vadd.f32 %v1146, %v1225
        %v1227 = vpop.f32.mrf.mxu0
        %1228 = vdwg.mxu0
        %v1229 = vadd.f32 %v1221, %v852
        %v1230 = vadd.f32 %v1226, %v853
        %v1231 = vmul.f32 %v1229, %v353
        %v1232 = vmul.f32 %v1230, %v358
        %v1233 = vlaneseq
        %v1234 = vshrl.u32 %v1233, 7
        %v1235 = vsub.s32 0, %v1234
        %v1236 = vrot.slane %v1231, %v1235
        %v1237 = vlaneseq
        %v1238 = vshrl.u32 %v1237, 7
        %v1239 = vsub.s32 7, %v1238
        %v1240 = vrot.slane %v1232, %v1239
        %v1241 = vrot.slane %v1231, 6
        %v1242 = vrot.slane %v1232, 6
        %v1243 = vsel %vm477, %v1241, %v1242
        %v1244 = vsel %vm477, %v1242, %v1241
        %v1245 = vsel %vm477, %v1236, %v1244
        %v1246 = vsel %vm478, %v1236, %v1243
        %v1247 = vrot.slane %v1231, 7
        %v1248 = vrot.slane %v1232, 7
        %v1249 = vsel %vm475, %v1247, %v1248
        %v1250 = vsel %vm475, %v1248, %v1247
        %v1251 = vsel %vm475, %v1236, %v1250
        %v1252 = vsel %vm476, %v1236, %v1249
        %v1253 = vrot.slane %v1231, 1
        %v1254 = vrot.slane %v1232, 1
        %v1255 = vsel %vm505, %v1253, %v1254
        %v1256 = vsel %vm505, %v1254, %v1253
        %v1257 = vsel %vm479, %v1240, %v1255
        %v1258 = vsel %vm480, %v1240, %v1256
        %v1259 = vrot.slane %v1231, 2
        %v1260 = vrot.slane %v1232, 2
        %v1261 = vsel %vm512, %v1259, %v1260
        %v1262 = vsel %vm512, %v1260, %v1259
        %v1263 = vsel %vm481, %v1240, %v1261
        %v1264 = vsel %vm482, %v1240, %v1262
        %1267 = vrot.lane.b32.xlu0 %v1251, 64
        %v1268 = vpop.permute.xlu0 %1267
        %1269 = vrot.lane.b32.xlu0 %v1252, 64
        %v1270 = vpop.permute.xlu0 %1269
        %1275 = vrot.lane.b32.xlu0 %v1257, 64
        %v1276 = vpop.permute.xlu0 %1275
        %1277 = vrot.lane.b32.xlu0 %v1258, 64
        %v1278 = vpop.permute.xlu0 %1277
        %v1281 = vsel %vm388, %v1245, %v1268
        %v1282 = vsel %vm388, %v1246, %v1270
        %v1283 = vsel %vm388, %v1231, %v1276
        %v1284 = vsel %vm388, %v1232, %v1278
        %s1285 = scalar_lea.vmem %s3, 640
        %v1286 = vld [vmem:[%s1285] sm:$0xff]
        %v1287 = vld [vmem:[%s1285 + $0x8] sm:$0xff]
        %v1288 = vld [vmem:[%s1285 + $0x10] sm:$0xff]
        %v1289 = vld [vmem:[%s1285 + $0x18] sm:$0xff]
        %v1290 = vld [vmem:[%s1285 + $0x20] sm:$0xff]
        %v1291 = vld [vmem:[%s1285 + $0x28] sm:$0xff]
        %v1292 = vld [vmem:[%s1285 + $0x30] sm:$0xff]
        %v1293 = vld [vmem:[%s1285 + $0x38] sm:$0xff]
        %v1294 = vld [vmem:[%s1285 + $0x40] sm:$0xff]
        %v1295 = vld [vmem:[%s1285 + $0x48] sm:$0xff]
        %v1296 = vld [vmem:[%s1285 + $0x50] sm:$0xff]
        %v1297 = vld [vmem:[%s1285 + $0x58] sm:$0xff]
        %v1298 = vld [vmem:[%s1285 + $0x60] sm:$0xff]
        %v1299 = vld [vmem:[%s1285 + $0x68] sm:$0xff]
        %v1300 = vld [vmem:[%s1285 + $0x70] sm:$0xff]
        %v1301 = vld [vmem:[%s1285 + $0x78] sm:$0xff]
        %v1302 = vld [vmem:[%s1285 + $0x80] sm:$0xff]
        %v1303 = vld [vmem:[%s1285 + $0x88] sm:$0xff]
        %v1304 = vld [vmem:[%s1285 + $0x90] sm:$0xff]
        %v1305 = vld [vmem:[%s1285 + $0x98] sm:$0xff]
        %v1306 = vld [vmem:[%s1285 + $0xa0] sm:$0xff]
        %v1307 = vld [vmem:[%s1285 + $0xa8] sm:$0xff]
        %v1308 = vld [vmem:[%s1285 + $0xb0] sm:$0xff]
        %v1309 = vld [vmem:[%s1285 + $0xb8] sm:$0xff]
        %v1310 = vld [vmem:[%s1285 + $0xc0] sm:$0xff]
        %v1311 = vld [vmem:[%s1285 + $0xc8] sm:$0xff]
        %v1312 = vld [vmem:[%s1285 + $0xd0] sm:$0xff]
        %v1313 = vld [vmem:[%s1285 + $0xd8] sm:$0xff]
        %v1314 = vld [vmem:[%s1285 + $0xe0] sm:$0xff]
        %v1315 = vld [vmem:[%s1285 + $0xe8] sm:$0xff]
        %v1316 = vld [vmem:[%s1285 + $0xf0] sm:$0xff]
        %v1317 = vld [vmem:[%s1285 + $0xf8] sm:$0xff]
        %v1318 = vld [vmem:[%s1285 + $0x100] sm:$0xff]
        %v1319 = vld [vmem:[%s1285 + $0x108] sm:$0xff]
        %v1320 = vld [vmem:[%s1285 + $0x110] sm:$0xff]
        %v1321 = vld [vmem:[%s1285 + $0x118] sm:$0xff]
        %v1322 = vld [vmem:[%s1285 + $0x120] sm:$0xff]
        %v1323 = vld [vmem:[%s1285 + $0x128] sm:$0xff]
        %v1324 = vld [vmem:[%s1285 + $0x130] sm:$0xff]
        %v1325 = vld [vmem:[%s1285 + $0x138] sm:$0xff]
        %v1327 = vsel %vm388, %v1263, 0
        %v1330 = vsel %vm388, %v1264, 0
        %1332 = vmatprep.subr.mxu0 0.0
        %1333 = vmatpush1.msra.mxu0 %v1301
        %1334 = vmatprep.subr.mxu0 0.0
        %1335 = vmatpush1.msra.mxu0 %v1300
        %1336 = vmatprep.subr.mxu0 0.0
        %1337 = vmatpush1.msra.mxu0 %v1299
        %1338 = vmatprep.subr.mxu0 0.0
        %1339 = vmatpush1.msra.mxu0 %v1298
        %1340 = vmatprep.subr.mxu0 0.0
        %1341 = vmatpush1.msra.mxu0 %v1297
        %1342 = vmatprep.subr.mxu0 0.0
        %1343 = vmatpush1.msra.mxu0 %v1296
        %1344 = vmatprep.subr.mxu0 0.0
        %1345 = vmatpush1.msra.mxu0 %v1295
        %1346 = vmatprep.subr.mxu0 0.0
        %1347 = vmatpush1.msra.mxu0 %v1294
        %1348 = vmatprep.subr.mxu0 0.0
        %1349 = vmatpush1.msra.mxu0 %v1293
        %1350 = vmatprep.subr.mxu0 0.0
        %1351 = vmatpush1.msra.mxu0 %v1292
        %1352 = vmatprep.subr.mxu0 0.0
        %1353 = vmatpush1.msra.mxu0 %v1291
        %1354 = vmatprep.subr.mxu0 0.0
        %1355 = vmatpush1.msra.mxu0 %v1290
        %1356 = vmatprep.subr.mxu0 0.0
        %1357 = vmatpush1.msra.mxu0 %v1289
        %1358 = vmatprep.subr.mxu0 0.0
        %1359 = vmatpush1.msra.mxu0 %v1288
        %1360 = vmatprep.subr.mxu0 0.0
        %1361 = vmatpush1.msra.mxu0 %v1287
        %1362 = vmatprep.subr.mxu0 0.0
        %1363 = vmatpush1.msra.mxu0 %v1286
        %1364 = vmatprep.subr.mxu0 0.0
        %1365 = vmatpush2.msra.mxu0 %v1317
        %1366 = vmatprep.subr.mxu0 0.0
        %1367 = vmatpush2.msra.mxu0 %v1316
        %1368 = vmatprep.subr.mxu0 0.0
        %1369 = vmatpush2.msra.mxu0 %v1315
        %1370 = vmatprep.subr.mxu0 0.0
        %1371 = vmatpush2.msra.mxu0 %v1314
        %1372 = vmatprep.subr.mxu0 0.0
        %1373 = vmatpush2.msra.mxu0 %v1313
        %1374 = vmatprep.subr.mxu0 0.0
        %1375 = vmatpush2.msra.mxu0 %v1312
        %1376 = vmatprep.subr.mxu0 0.0
        %1377 = vmatpush2.msra.mxu0 %v1311
        %1378 = vmatprep.subr.mxu0 0.0
        %1379 = vmatpush2.msra.mxu0 %v1310
        %1380 = vmatprep.subr.mxu0 0.0
        %1381 = vmatpush2.msra.mxu0 %v1309
        %1382 = vmatprep.subr.mxu0 0.0
        %1383 = vmatpush2.msra.mxu0 %v1308
        %1384 = vmatprep.subr.mxu0 0.0
        %1385 = vmatpush2.msra.mxu0 %v1307
        %1386 = vmatprep.subr.mxu0 0.0
        %1387 = vmatpush2.msra.mxu0 %v1306
        %1388 = vmatprep.subr.mxu0 0.0
        %1389 = vmatpush2.msra.mxu0 %v1305
        %1390 = vmatprep.subr.mxu0 0.0
        %1391 = vmatpush2.msra.mxu0 %v1304
        %1392 = vmatprep.subr.mxu0 0.0
        %1393 = vmatpush2.msra.mxu0 %v1303
        %1394 = vmatprep.subr.mxu0 0.0
        %1395 = vmatpush2.msra.mxu0 %v1302
        %1396 = vmatprep.mubr.f32.mxu0 %v1283
        %1397 = vmatmul.mubr.f32.gmra.mxu0 %v1281
        %v1398 = vpop.f32.mrf.mxu0
        %v1399 = vadd.f32 %v464, %v1398
        %v1400 = vpop.f32.mrf.mxu0
        %1401 = vmatprep.mubr.f32.mxu0 %v1284
        %1402 = vmatmul.mubr.f32.gmra.mxu0 %v1282
        %v1403 = vpop.f32.mrf.mxu0
        %v1404 = vadd.f32 %v470, %v1403
        %v1405 = vpop.f32.mrf.mxu0
        %1406 = vdwg.mxu0
        %1407 = vmatprep.subr.mxu0 0.0
        %1408 = vmatpush1.msra.mxu0 0.0
        %1409 = vmatprep.subr.mxu0 0.0
        %1410 = vmatpush1.msra.mxu0 0.0
        %1411 = vmatprep.subr.mxu0 0.0
        %1412 = vmatpush1.msra.mxu0 0.0
        %1413 = vmatprep.subr.mxu0 0.0
        %1414 = vmatpush1.msra.mxu0 0.0
        %1415 = vmatprep.subr.mxu0 0.0
        %1416 = vmatpush1.msra.mxu0 0.0
        %1417 = vmatprep.subr.mxu0 0.0
        %1418 = vmatpush1.msra.mxu0 0.0
        %1419 = vmatprep.subr.mxu0 0.0
        %1420 = vmatpush1.msra.mxu0 0.0
        %1421 = vmatprep.subr.mxu0 0.0
        %1422 = vmatpush1.msra.mxu0 0.0
        %1423 = vmatprep.subr.mxu0 0.0
        %1424 = vmatpush1.msra.mxu0 %v1325
        %1425 = vmatprep.subr.mxu0 0.0
        %1426 = vmatpush1.msra.mxu0 %v1324
        %1427 = vmatprep.subr.mxu0 0.0
        %1428 = vmatpush1.msra.mxu0 %v1323
        %1429 = vmatprep.subr.mxu0 0.0
        %1430 = vmatpush1.msra.mxu0 %v1322
        %1431 = vmatprep.subr.mxu0 0.0
        %1432 = vmatpush1.msra.mxu0 %v1321
        %1433 = vmatprep.subr.mxu0 0.0
        %1434 = vmatpush1.msra.mxu0 %v1320
        %1435 = vmatprep.subr.mxu0 0.0
        %1436 = vmatpush1.msra.mxu0 %v1319
        %1437 = vmatprep.subr.mxu0 0.0
        %1438 = vmatpush1.msra.mxu0 %v1318
        %1439 = vmatprep.subr.mxu0 0.0
        %1440 = vmatpush2.msra.mxu0 0.0
        %1441 = vmatprep.subr.mxu0 0.0
        %1442 = vmatpush2.msra.mxu0 0.0
        %1443 = vmatprep.subr.mxu0 0.0
        %1444 = vmatpush2.msra.mxu0 0.0
        %1445 = vmatprep.subr.mxu0 0.0
        %1446 = vmatpush2.msra.mxu0 0.0
        %1447 = vmatprep.subr.mxu0 0.0
        %1448 = vmatpush2.msra.mxu0 0.0
        %1449 = vmatprep.subr.mxu0 0.0
        %1450 = vmatpush2.msra.mxu0 0.0
        %1451 = vmatprep.subr.mxu0 0.0
        %1452 = vmatpush2.msra.mxu0 0.0
        %1453 = vmatprep.subr.mxu0 0.0
        %1454 = vmatpush2.msra.mxu0 0.0
        %1455 = vmatprep.subr.mxu0 0.0
        %1456 = vmatpush2.msra.mxu0 0.0
        %1457 = vmatprep.subr.mxu0 0.0
        %1458 = vmatpush2.msra.mxu0 0.0
        %1459 = vmatprep.subr.mxu0 0.0
        %1460 = vmatpush2.msra.mxu0 0.0
        %1461 = vmatprep.subr.mxu0 0.0
        %1462 = vmatpush2.msra.mxu0 0.0
        %1463 = vmatprep.subr.mxu0 0.0
        %1464 = vmatpush2.msra.mxu0 0.0
        %1465 = vmatprep.subr.mxu0 0.0
        %1466 = vmatpush2.msra.mxu0 0.0
        %1467 = vmatprep.subr.mxu0 0.0
        %1468 = vmatpush2.msra.mxu0 0.0
        %1469 = vmatprep.subr.mxu0 0.0
        %1470 = vmatpush2.msra.mxu0 0.0
        %1471 = vmatprep.mubr.f32.mxu0 0.0
        %1472 = vmatmul.mubr.f32.gmra.mxu0 %v1327
        %v1473 = vpop.f32.mrf.mxu0
        %v1474 = vadd.f32 %v1399, %v1473
        %v1475 = vpop.f32.mrf.mxu0
        %1476 = vmatprep.mubr.f32.mxu0 0.0
        %1477 = vmatmul.mubr.f32.gmra.mxu0 %v1330
        %v1478 = vpop.f32.mrf.mxu0
        %v1479 = vadd.f32 %v1404, %v1478
        %v1480 = vpop.f32.mrf.mxu0
        %1481 = vdwg.mxu0
        %v1482 = vtanh.pop %v1474
        %v1483 = vtanh.pop %v1479
        %v1484 = vxor.u32 %v1474, 2147483648
        %v1485 = vxor.u32 %v1479, 2147483648
        %v1486 = vmul.f32 %v1484, 1.442695
        %v1487 = vpow.pop %v1486
        %v1488 = vmul.f32 %v1485, 1.442695
        %v1489 = vpow.pop %v1488
        %v1490 = vadd.f32 %v1487, 1.0
        %v1491 = vadd.f32 %v1489, 1.0
        %v1492 = vrcp.pop %v1490
        %v1493 = vmul.f32 1.0, %v1492
        %v1494 = vrcp.pop %v1491
        %v1495 = vmul.f32 1.0, %v1494
        %1498 = vrot.lane.b32.xlu0 %v1493, 96
        %v1499 = vpop.permute.xlu0 %1498
        %1500 = vrot.lane.b32.xlu0 %v1495, 96
        %v1501 = vpop.permute.xlu0 %1500
        %v1504 = vmul.f32 %v1482, %v1499
        %v1505 = vmul.f32 %v1483, %v1501
        %s1506 = scalar_lea.vmem %s6, 64
        %v1507 = vld [vmem:[%s1506] sm:$0xff]
        %v1508 = vld [vmem:[%s1506 + $0x8] sm:$0xff]
        %v1509 = vld [vmem:[%s1506 + $0x10] sm:$0xff]
        %v1510 = vld [vmem:[%s1506 + $0x18] sm:$0xff]
        %s1511 = scalar_lea.vmem %s7, 2
        %v1512 = vld [vmem:[%s1511] sm:$0x1]
        %v1514 = vlaneseq
        %v1515 = vshrl.u32 %v1514, 7
        %v1516 = vsub.s32 0, %v1515
        %v1517 = vrot.slane %v1512, %v1516
        %v1520 = vsel %vm768, %v1504, 0
        %v1523 = vsel %vm768, %v1505, 0
        %1525 = vmatprep.subr.mxu0 0.0
        %1526 = vmatpush1.msra.mxu0 0.0
        %1527 = vmatprep.subr.mxu0 0.0
        %1528 = vmatpush1.msra.mxu0 0.0
        %1529 = vmatprep.subr.mxu0 0.0
        %1530 = vmatpush1.msra.mxu0 0.0
        %1531 = vmatprep.subr.mxu0 0.0
        %1532 = vmatpush1.msra.mxu0 0.0
        %1533 = vmatprep.subr.mxu0 0.0
        %1534 = vmatpush1.msra.mxu0 0.0
        %1535 = vmatprep.subr.mxu0 0.0
        %1536 = vmatpush1.msra.mxu0 0.0
        %1537 = vmatprep.subr.mxu0 0.0
        %1538 = vmatpush1.msra.mxu0 0.0
        %1539 = vmatprep.subr.mxu0 0.0
        %1540 = vmatpush1.msra.mxu0 0.0
        %1541 = vmatprep.subr.mxu0 0.0
        %1542 = vmatpush1.msra.mxu0 0.0
        %1543 = vmatprep.subr.mxu0 0.0
        %1544 = vmatpush1.msra.mxu0 0.0
        %1545 = vmatprep.subr.mxu0 0.0
        %1546 = vmatpush1.msra.mxu0 0.0
        %1547 = vmatprep.subr.mxu0 0.0
        %1548 = vmatpush1.msra.mxu0 0.0
        %1549 = vmatprep.subr.mxu0 0.0
        %1550 = vmatpush1.msra.mxu0 %v1510
        %1551 = vmatprep.subr.mxu0 0.0
        %1552 = vmatpush1.msra.mxu0 %v1509
        %1553 = vmatprep.subr.mxu0 0.0
        %1554 = vmatpush1.msra.mxu0 %v1508
        %1555 = vmatprep.subr.mxu0 0.0
        %1556 = vmatpush1.msra.mxu0 %v1507
        %1557 = vmatprep.subr.mxu0 0.0
        %1558 = vmatpush2.msra.mxu0 0.0
        %1559 = vmatprep.subr.mxu0 0.0
        %1560 = vmatpush2.msra.mxu0 0.0
        %1561 = vmatprep.subr.mxu0 0.0
        %1562 = vmatpush2.msra.mxu0 0.0
        %1563 = vmatprep.subr.mxu0 0.0
        %1564 = vmatpush2.msra.mxu0 0.0
        %1565 = vmatprep.subr.mxu0 0.0
        %1566 = vmatpush2.msra.mxu0 0.0
        %1567 = vmatprep.subr.mxu0 0.0
        %1568 = vmatpush2.msra.mxu0 0.0
        %1569 = vmatprep.subr.mxu0 0.0
        %1570 = vmatpush2.msra.mxu0 0.0
        %1571 = vmatprep.subr.mxu0 0.0
        %1572 = vmatpush2.msra.mxu0 0.0
        %1573 = vmatprep.subr.mxu0 0.0
        %1574 = vmatpush2.msra.mxu0 0.0
        %1575 = vmatprep.subr.mxu0 0.0
        %1576 = vmatpush2.msra.mxu0 0.0
        %1577 = vmatprep.subr.mxu0 0.0
        %1578 = vmatpush2.msra.mxu0 0.0
        %1579 = vmatprep.subr.mxu0 0.0
        %1580 = vmatpush2.msra.mxu0 0.0
        %1581 = vmatprep.subr.mxu0 0.0
        %1582 = vmatpush2.msra.mxu0 0.0
        %1583 = vmatprep.subr.mxu0 0.0
        %1584 = vmatpush2.msra.mxu0 0.0
        %1585 = vmatprep.subr.mxu0 0.0
        %1586 = vmatpush2.msra.mxu0 0.0
        %1587 = vmatprep.subr.mxu0 0.0
        %1588 = vmatpush2.msra.mxu0 0.0
        %1589 = vmatprep.mubr.f32.mxu0 0.0
        %1590 = vmatmul.mubr.f32.gmra.mxu0 %v1520
        %v1591 = vpop.f32.mrf.mxu0
        %v1592 = vadd.f32 %v1517, %v1591
        %v1593 = vpop.f32.mrf.mxu0
        %1594 = vmatprep.mubr.f32.mxu0 0.0
        %1595 = vmatmul.mubr.f32.gmra.mxu0 %v1523
        %v1596 = vpop.f32.mrf.mxu0
        %v1597 = vadd.f32 %v1517, %v1596
        %v1598 = vpop.f32.mrf.mxu0
        %1599 = vdwg.mxu0
        %v1600 = vadd.f32 %v1592, %v1231
        %v1601 = vadd.f32 %v1597, %v1232
        %v1602 = vmul.f32 %v1600, %v353
        %v1603 = vmul.f32 %v1601, %v358
        %v1604 = vlaneseq
        %v1605 = vshrl.u32 %v1604, 7
        %v1606 = vsub.s32 0, %v1605
        %v1607 = vrot.slane %v1602, %v1606
        %v1608 = vlaneseq
        %v1609 = vshrl.u32 %v1608, 7
        %v1610 = vsub.s32 7, %v1609
        %v1611 = vrot.slane %v1603, %v1610
        %v1612 = vrot.slane %v1602, 6
        %v1613 = vrot.slane %v1603, 6
        %v1614 = vsel %vm477, %v1612, %v1613
        %v1615 = vsel %vm477, %v1613, %v1612
        %v1616 = vsel %vm477, %v1607, %v1615
        %v1617 = vsel %vm478, %v1607, %v1614
        %v1618 = vrot.slane %v1602, 7
        %v1619 = vrot.slane %v1603, 7
        %v1620 = vsel %vm475, %v1618, %v1619
        %v1621 = vsel %vm475, %v1619, %v1618
        %v1622 = vsel %vm475, %v1607, %v1621
        %v1623 = vsel %vm476, %v1607, %v1620
        %v1624 = vrot.slane %v1602, 1
        %v1625 = vrot.slane %v1603, 1
        %v1626 = vsel %vm505, %v1624, %v1625
        %v1627 = vsel %vm505, %v1625, %v1624
        %v1628 = vsel %vm479, %v1611, %v1626
        %v1629 = vsel %vm480, %v1611, %v1627
        %v1630 = vrot.slane %v1602, 2
        %v1631 = vrot.slane %v1603, 2
        %v1632 = vsel %vm512, %v1630, %v1631
        %v1633 = vsel %vm512, %v1631, %v1630
        %v1634 = vsel %vm481, %v1611, %v1632
        %v1635 = vsel %vm482, %v1611, %v1633
        %1638 = vrot.lane.b32.xlu0 %v1622, 64
        %v1639 = vpop.permute.xlu0 %1638
        %1640 = vrot.lane.b32.xlu0 %v1623, 64
        %v1641 = vpop.permute.xlu0 %1640
        %1646 = vrot.lane.b32.xlu0 %v1628, 64
        %v1647 = vpop.permute.xlu0 %1646
        %1648 = vrot.lane.b32.xlu0 %v1629, 64
        %v1649 = vpop.permute.xlu0 %1648
        %v1652 = vsel %vm388, %v1616, %v1639
        %v1653 = vsel %vm388, %v1617, %v1641
        %v1654 = vsel %vm388, %v1602, %v1647
        %v1655 = vsel %vm388, %v1603, %v1649
        %s1656 = scalar_lea.vmem %s3, 960
        %v1657 = vld [vmem:[%s1656] sm:$0xff]
        %v1658 = vld [vmem:[%s1656 + $0x8] sm:$0xff]
        %v1659 = vld [vmem:[%s1656 + $0x10] sm:$0xff]
        %v1660 = vld [vmem:[%s1656 + $0x18] sm:$0xff]
        %v1661 = vld [vmem:[%s1656 + $0x20] sm:$0xff]
        %v1662 = vld [vmem:[%s1656 + $0x28] sm:$0xff]
        %v1663 = vld [vmem:[%s1656 + $0x30] sm:$0xff]
        %v1664 = vld [vmem:[%s1656 + $0x38] sm:$0xff]
        %v1665 = vld [vmem:[%s1656 + $0x40] sm:$0xff]
        %v1666 = vld [vmem:[%s1656 + $0x48] sm:$0xff]
        %v1667 = vld [vmem:[%s1656 + $0x50] sm:$0xff]
        %v1668 = vld [vmem:[%s1656 + $0x58] sm:$0xff]
        %v1669 = vld [vmem:[%s1656 + $0x60] sm:$0xff]
        %v1670 = vld [vmem:[%s1656 + $0x68] sm:$0xff]
        %v1671 = vld [vmem:[%s1656 + $0x70] sm:$0xff]
        %v1672 = vld [vmem:[%s1656 + $0x78] sm:$0xff]
        %v1673 = vld [vmem:[%s1656 + $0x80] sm:$0xff]
        %v1674 = vld [vmem:[%s1656 + $0x88] sm:$0xff]
        %v1675 = vld [vmem:[%s1656 + $0x90] sm:$0xff]
        %v1676 = vld [vmem:[%s1656 + $0x98] sm:$0xff]
        %v1677 = vld [vmem:[%s1656 + $0xa0] sm:$0xff]
        %v1678 = vld [vmem:[%s1656 + $0xa8] sm:$0xff]
        %v1679 = vld [vmem:[%s1656 + $0xb0] sm:$0xff]
        %v1680 = vld [vmem:[%s1656 + $0xb8] sm:$0xff]
        %v1681 = vld [vmem:[%s1656 + $0xc0] sm:$0xff]
        %v1682 = vld [vmem:[%s1656 + $0xc8] sm:$0xff]
        %v1683 = vld [vmem:[%s1656 + $0xd0] sm:$0xff]
        %v1684 = vld [vmem:[%s1656 + $0xd8] sm:$0xff]
        %v1685 = vld [vmem:[%s1656 + $0xe0] sm:$0xff]
        %v1686 = vld [vmem:[%s1656 + $0xe8] sm:$0xff]
        %v1687 = vld [vmem:[%s1656 + $0xf0] sm:$0xff]
        %v1688 = vld [vmem:[%s1656 + $0xf8] sm:$0xff]
        %v1689 = vld [vmem:[%s1656 + $0x100] sm:$0xff]
        %v1690 = vld [vmem:[%s1656 + $0x108] sm:$0xff]
        %v1691 = vld [vmem:[%s1656 + $0x110] sm:$0xff]
        %v1692 = vld [vmem:[%s1656 + $0x118] sm:$0xff]
        %v1693 = vld [vmem:[%s1656 + $0x120] sm:$0xff]
        %v1694 = vld [vmem:[%s1656 + $0x128] sm:$0xff]
        %v1695 = vld [vmem:[%s1656 + $0x130] sm:$0xff]
        %v1696 = vld [vmem:[%s1656 + $0x138] sm:$0xff]
        %1699 = vrot.lane.b32.xlu0 %v464, 64
        %v1700 = vpop.permute.xlu0 %1699
        %1701 = vrot.lane.b32.xlu0 %v470, 64
        %v1702 = vpop.permute.xlu0 %1701
        %v1706 = vsel %vm388, %v1634, 0
        %v1709 = vsel %vm388, %v1635, 0
        %1711 = vmatprep.subr.mxu0 0.0
        %1712 = vmatpush1.msra.mxu0 %v1672
        %1713 = vmatprep.subr.mxu0 0.0
        %1714 = vmatpush1.msra.mxu0 %v1671
        %1715 = vmatprep.subr.mxu0 0.0
        %1716 = vmatpush1.msra.mxu0 %v1670
        %1717 = vmatprep.subr.mxu0 0.0
        %1718 = vmatpush1.msra.mxu0 %v1669
        %1719 = vmatprep.subr.mxu0 0.0
        %1720 = vmatpush1.msra.mxu0 %v1668
        %1721 = vmatprep.subr.mxu0 0.0
        %1722 = vmatpush1.msra.mxu0 %v1667
        %1723 = vmatprep.subr.mxu0 0.0
        %1724 = vmatpush1.msra.mxu0 %v1666
        %1725 = vmatprep.subr.mxu0 0.0
        %1726 = vmatpush1.msra.mxu0 %v1665
        %1727 = vmatprep.subr.mxu0 0.0
        %1728 = vmatpush1.msra.mxu0 %v1664
        %1729 = vmatprep.subr.mxu0 0.0
        %1730 = vmatpush1.msra.mxu0 %v1663
        %1731 = vmatprep.subr.mxu0 0.0
        %1732 = vmatpush1.msra.mxu0 %v1662
        %1733 = vmatprep.subr.mxu0 0.0
        %1734 = vmatpush1.msra.mxu0 %v1661
        %1735 = vmatprep.subr.mxu0 0.0
        %1736 = vmatpush1.msra.mxu0 %v1660
        %1737 = vmatprep.subr.mxu0 0.0
        %1738 = vmatpush1.msra.mxu0 %v1659
        %1739 = vmatprep.subr.mxu0 0.0
        %1740 = vmatpush1.msra.mxu0 %v1658
        %1741 = vmatprep.subr.mxu0 0.0
        %1742 = vmatpush1.msra.mxu0 %v1657
        %1743 = vmatprep.subr.mxu0 0.0
        %1744 = vmatpush2.msra.mxu0 %v1688
        %1745 = vmatprep.subr.mxu0 0.0
        %1746 = vmatpush2.msra.mxu0 %v1687
        %1747 = vmatprep.subr.mxu0 0.0
        %1748 = vmatpush2.msra.mxu0 %v1686
        %1749 = vmatprep.subr.mxu0 0.0
        %1750 = vmatpush2.msra.mxu0 %v1685
        %1751 = vmatprep.subr.mxu0 0.0
        %1752 = vmatpush2.msra.mxu0 %v1684
        %1753 = vmatprep.subr.mxu0 0.0
        %1754 = vmatpush2.msra.mxu0 %v1683
        %1755 = vmatprep.subr.mxu0 0.0
        %1756 = vmatpush2.msra.mxu0 %v1682
        %1757 = vmatprep.subr.mxu0 0.0
        %1758 = vmatpush2.msra.mxu0 %v1681
        %1759 = vmatprep.subr.mxu0 0.0
        %1760 = vmatpush2.msra.mxu0 %v1680
        %1761 = vmatprep.subr.mxu0 0.0
        %1762 = vmatpush2.msra.mxu0 %v1679
        %1763 = vmatprep.subr.mxu0 0.0
        %1764 = vmatpush2.msra.mxu0 %v1678
        %1765 = vmatprep.subr.mxu0 0.0
        %1766 = vmatpush2.msra.mxu0 %v1677
        %1767 = vmatprep.subr.mxu0 0.0
        %1768 = vmatpush2.msra.mxu0 %v1676
        %1769 = vmatprep.subr.mxu0 0.0
        %1770 = vmatpush2.msra.mxu0 %v1675
        %1771 = vmatprep.subr.mxu0 0.0
        %1772 = vmatpush2.msra.mxu0 %v1674
        %1773 = vmatprep.subr.mxu0 0.0
        %1774 = vmatpush2.msra.mxu0 %v1673
        %1775 = vmatprep.mubr.f32.mxu0 %v1654
        %1776 = vmatmul.mubr.f32.gmra.mxu0 %v1652
        %v1777 = vpop.f32.mrf.mxu0
        %v1778 = vadd.f32 %v1700, %v1777
        %v1779 = vpop.f32.mrf.mxu0
        %1780 = vmatprep.mubr.f32.mxu0 %v1655
        %1781 = vmatmul.mubr.f32.gmra.mxu0 %v1653
        %v1782 = vpop.f32.mrf.mxu0
        %v1783 = vadd.f32 %v1702, %v1782
        %v1784 = vpop.f32.mrf.mxu0
        %1785 = vdwg.mxu0
        %1786 = vmatprep.subr.mxu0 0.0
        %1787 = vmatpush1.msra.mxu0 0.0
        %1788 = vmatprep.subr.mxu0 0.0
        %1789 = vmatpush1.msra.mxu0 0.0
        %1790 = vmatprep.subr.mxu0 0.0
        %1791 = vmatpush1.msra.mxu0 0.0
        %1792 = vmatprep.subr.mxu0 0.0
        %1793 = vmatpush1.msra.mxu0 0.0
        %1794 = vmatprep.subr.mxu0 0.0
        %1795 = vmatpush1.msra.mxu0 0.0
        %1796 = vmatprep.subr.mxu0 0.0
        %1797 = vmatpush1.msra.mxu0 0.0
        %1798 = vmatprep.subr.mxu0 0.0
        %1799 = vmatpush1.msra.mxu0 0.0
        %1800 = vmatprep.subr.mxu0 0.0
        %1801 = vmatpush1.msra.mxu0 0.0
        %1802 = vmatprep.subr.mxu0 0.0
        %1803 = vmatpush1.msra.mxu0 %v1696
        %1804 = vmatprep.subr.mxu0 0.0
        %1805 = vmatpush1.msra.mxu0 %v1695
        %1806 = vmatprep.subr.mxu0 0.0
        %1807 = vmatpush1.msra.mxu0 %v1694
        %1808 = vmatprep.subr.mxu0 0.0
        %1809 = vmatpush1.msra.mxu0 %v1693
        %1810 = vmatprep.subr.mxu0 0.0
        %1811 = vmatpush1.msra.mxu0 %v1692
        %1812 = vmatprep.subr.mxu0 0.0
        %1813 = vmatpush1.msra.mxu0 %v1691
        %1814 = vmatprep.subr.mxu0 0.0
        %1815 = vmatpush1.msra.mxu0 %v1690
        %1816 = vmatprep.subr.mxu0 0.0
        %1817 = vmatpush1.msra.mxu0 %v1689
        %1818 = vmatprep.subr.mxu0 0.0
        %1819 = vmatpush2.msra.mxu0 0.0
        %1820 = vmatprep.subr.mxu0 0.0
        %1821 = vmatpush2.msra.mxu0 0.0
        %1822 = vmatprep.subr.mxu0 0.0
        %1823 = vmatpush2.msra.mxu0 0.0
        %1824 = vmatprep.subr.mxu0 0.0
        %1825 = vmatpush2.msra.mxu0 0.0
        %1826 = vmatprep.subr.mxu0 0.0
        %1827 = vmatpush2.msra.mxu0 0.0
        %1828 = vmatprep.subr.mxu0 0.0
        %1829 = vmatpush2.msra.mxu0 0.0
        %1830 = vmatprep.subr.mxu0 0.0
        %1831 = vmatpush2.msra.mxu0 0.0
        %1832 = vmatprep.subr.mxu0 0.0
        %1833 = vmatpush2.msra.mxu0 0.0
        %1834 = vmatprep.subr.mxu0 0.0
        %1835 = vmatpush2.msra.mxu0 0.0
        %1836 = vmatprep.subr.mxu0 0.0
        %1837 = vmatpush2.msra.mxu0 0.0
        %1838 = vmatprep.subr.mxu0 0.0
        %1839 = vmatpush2.msra.mxu0 0.0
        %1840 = vmatprep.subr.mxu0 0.0
        %1841 = vmatpush2.msra.mxu0 0.0
        %1842 = vmatprep.subr.mxu0 0.0
        %1843 = vmatpush2.msra.mxu0 0.0
        %1844 = vmatprep.subr.mxu0 0.0
        %1845 = vmatpush2.msra.mxu0 0.0
        %1846 = vmatprep.subr.mxu0 0.0
        %1847 = vmatpush2.msra.mxu0 0.0
        %1848 = vmatprep.subr.mxu0 0.0
        %1849 = vmatpush2.msra.mxu0 0.0
        %1850 = vmatprep.mubr.f32.mxu0 0.0
        %1851 = vmatmul.mubr.f32.gmra.mxu0 %v1706
        %v1852 = vpop.f32.mrf.mxu0
        %v1853 = vadd.f32 %v1778, %v1852
        %v1854 = vpop.f32.mrf.mxu0
        %1855 = vmatprep.mubr.f32.mxu0 0.0
        %1856 = vmatmul.mubr.f32.gmra.mxu0 %v1709
        %v1857 = vpop.f32.mrf.mxu0
        %v1858 = vadd.f32 %v1783, %v1857
        %v1859 = vpop.f32.mrf.mxu0
        %1860 = vdwg.mxu0
        %v1861 = vtanh.pop %v1853
        %v1862 = vtanh.pop %v1858
        %v1863 = vxor.u32 %v1853, 2147483648
        %v1864 = vxor.u32 %v1858, 2147483648
        %v1865 = vmul.f32 %v1863, 1.442695
        %v1866 = vpow.pop %v1865
        %v1867 = vmul.f32 %v1864, 1.442695
        %v1868 = vpow.pop %v1867
        %v1869 = vadd.f32 %v1866, 1.0
        %v1870 = vadd.f32 %v1868, 1.0
        %v1871 = vrcp.pop %v1869
        %v1872 = vmul.f32 1.0, %v1871
        %v1873 = vrcp.pop %v1870
        %v1874 = vmul.f32 1.0, %v1873
        %1877 = vrot.lane.b32.xlu0 %v1872, 96
        %v1878 = vpop.permute.xlu0 %1877
        %1879 = vrot.lane.b32.xlu0 %v1874, 96
        %v1880 = vpop.permute.xlu0 %1879
        %v1883 = vmul.f32 %v1861, %v1878
        %v1884 = vmul.f32 %v1862, %v1880
        %s1885 = scalar_lea.vmem %s6, 96
        %v1886 = vld [vmem:[%s1885] sm:$0xff]
        %v1887 = vld [vmem:[%s1885 + $0x8] sm:$0xff]
        %v1888 = vld [vmem:[%s1885 + $0x10] sm:$0xff]
        %v1889 = vld [vmem:[%s1885 + $0x18] sm:$0xff]
        %s1890 = scalar_lea.vmem %s7, 3
        %v1891 = vld [vmem:[%s1890] sm:$0x1]
        %v1893 = vlaneseq
        %v1894 = vshrl.u32 %v1893, 7
        %v1895 = vsub.s32 0, %v1894
        %v1896 = vrot.slane %v1891, %v1895
        %v1899 = vsel %vm768, %v1883, 0
        %v1902 = vsel %vm768, %v1884, 0
        %1904 = vmatprep.subr.mxu0 0.0
        %1905 = vmatpush1.msra.mxu0 0.0
        %1906 = vmatprep.subr.mxu0 0.0
        %1907 = vmatpush1.msra.mxu0 0.0
        %1908 = vmatprep.subr.mxu0 0.0
        %1909 = vmatpush1.msra.mxu0 0.0
        %1910 = vmatprep.subr.mxu0 0.0
        %1911 = vmatpush1.msra.mxu0 0.0
        %1912 = vmatprep.subr.mxu0 0.0
        %1913 = vmatpush1.msra.mxu0 0.0
        %1914 = vmatprep.subr.mxu0 0.0
        %1915 = vmatpush1.msra.mxu0 0.0
        %1916 = vmatprep.subr.mxu0 0.0
        %1917 = vmatpush1.msra.mxu0 0.0
        %1918 = vmatprep.subr.mxu0 0.0
        %1919 = vmatpush1.msra.mxu0 0.0
        %1920 = vmatprep.subr.mxu0 0.0
        %1921 = vmatpush1.msra.mxu0 0.0
        %1922 = vmatprep.subr.mxu0 0.0
        %1923 = vmatpush1.msra.mxu0 0.0
        %1924 = vmatprep.subr.mxu0 0.0
        %1925 = vmatpush1.msra.mxu0 0.0
        %1926 = vmatprep.subr.mxu0 0.0
        %1927 = vmatpush1.msra.mxu0 0.0
        %1928 = vmatprep.subr.mxu0 0.0
        %1929 = vmatpush1.msra.mxu0 %v1889
        %1930 = vmatprep.subr.mxu0 0.0
        %1931 = vmatpush1.msra.mxu0 %v1888
        %1932 = vmatprep.subr.mxu0 0.0
        %1933 = vmatpush1.msra.mxu0 %v1887
        %1934 = vmatprep.subr.mxu0 0.0
        %1935 = vmatpush1.msra.mxu0 %v1886
        %1936 = vmatprep.subr.mxu0 0.0
        %1937 = vmatpush2.msra.mxu0 0.0
        %1938 = vmatprep.subr.mxu0 0.0
        %1939 = vmatpush2.msra.mxu0 0.0
        %1940 = vmatprep.subr.mxu0 0.0
        %1941 = vmatpush2.msra.mxu0 0.0
        %1942 = vmatprep.subr.mxu0 0.0
        %1943 = vmatpush2.msra.mxu0 0.0
        %1944 = vmatprep.subr.mxu0 0.0
        %1945 = vmatpush2.msra.mxu0 0.0
        %1946 = vmatprep.subr.mxu0 0.0
        %1947 = vmatpush2.msra.mxu0 0.0
        %1948 = vmatprep.subr.mxu0 0.0
        %1949 = vmatpush2.msra.mxu0 0.0
        %1950 = vmatprep.subr.mxu0 0.0
        %1951 = vmatpush2.msra.mxu0 0.0
        %1952 = vmatprep.subr.mxu0 0.0
        %1953 = vmatpush2.msra.mxu0 0.0
        %1954 = vmatprep.subr.mxu0 0.0
        %1955 = vmatpush2.msra.mxu0 0.0
        %1956 = vmatprep.subr.mxu0 0.0
        %1957 = vmatpush2.msra.mxu0 0.0
        %1958 = vmatprep.subr.mxu0 0.0
        %1959 = vmatpush2.msra.mxu0 0.0
        %1960 = vmatprep.subr.mxu0 0.0
        %1961 = vmatpush2.msra.mxu0 0.0
        %1962 = vmatprep.subr.mxu0 0.0
        %1963 = vmatpush2.msra.mxu0 0.0
        %1964 = vmatprep.subr.mxu0 0.0
        %1965 = vmatpush2.msra.mxu0 0.0
        %1966 = vmatprep.subr.mxu0 0.0
        %1967 = vmatpush2.msra.mxu0 0.0
        %1968 = vmatprep.mubr.f32.mxu0 0.0
        %1969 = vmatmul.mubr.f32.gmra.mxu0 %v1899
        %v1970 = vpop.f32.mrf.mxu0
        %v1971 = vadd.f32 %v1896, %v1970
        %v1972 = vpop.f32.mrf.mxu0
        %1973 = vmatprep.mubr.f32.mxu0 0.0
        %1974 = vmatmul.mubr.f32.gmra.mxu0 %v1902
        %v1975 = vpop.f32.mrf.mxu0
        %v1976 = vadd.f32 %v1896, %v1975
        %v1977 = vpop.f32.mrf.mxu0
        %1978 = vdwg.mxu0
        %v1979 = vadd.f32 %v1971, %v1602
        %v1980 = vadd.f32 %v1976, %v1603
        %v1981 = vmul.f32 %v1979, %v353
        %v1982 = vmul.f32 %v1980, %v358
        %1983 = vst.msk [vmem:[%s328] sm:$0xff] %vm388, %v1981
        %1984 = vst.msk [vmem:[%s328 + $0x8] sm:$0xff] %vm388, %v1982
        %s1985 = sand.u32 %s213, 1
        %s1986 = scalar_lea.sflag [#allocation3], %s1985
        %s1987 = sand.u32 %s213, 1
        %s1988 = smul.addr %s1987, 16
        %s1989 = scalar_lea.vmem [#allocation2], %s1988
        // Predicated region
        $region53: #{tpu_custom_call.1} parent=51 // pred_check
          %p1990 = pneg %p223
        $region54: #{tpu_custom_call.1} parent=51 // pred_check_branch
          %1992 = sbr.rel (%p1990) target = $region56
        $region55: #{tpu_custom_call.1} parent=51 // pred_region
          %s1994 = ssub.s32 256, 256
          %1995 = vsyncadd %s1986, %s1994
          %s1996 = smul.addr %s22, 2
          %s1997 = smul.addr %s1996, 128
          %s1998 = scalar_lea.hbm %s8, %s1997
          %s1999 = sshll.u32 %s1989, 4
          %s2000 = int_to_ptr.vmem [resolvable:$true] %s1999
          %2005 = dma.vmem_to_hbm [thread:$0]  %s2000, 256, %s1998, %s1986, 128, 128, 8
        $region56: #{tpu_custom_call.1} parent=51 // pred_fallthru
          _
      $region52: #{tpu_custom_call.1} parent=5 // pred_fallthru
        _
      %p2006 = scmp.le.s32.totalorder 2, %s17
      // Predicated region
      $region57: #{tpu_custom_call.1} parent=5 // pred_check
        %p2007 = pneg %p2006
      $region58: #{tpu_custom_call.1} parent=5 // pred_check_branch
        %2009 = sbr.rel (%p2007) target = $region60
      $region59: #{tpu_custom_call.1} parent=5 // pred_region
        %s2010 = ssub.s32 %s17, 2
        // Predicated region
        $region61: #{tpu_custom_call.1} parent=59 // pred_check
          %p2011 = pneg %p229
        $region62: #{tpu_custom_call.1} parent=59 // pred_check_branch
          %2013 = sbr.rel (%p2011) target = $region64
        $region63: #{tpu_custom_call.1} parent=59 // pred_region
          %s2014 = sand.u32 %s214, 1
          %s2015 = scalar_lea.sflag [#allocation3], %s2014
          %s2016 = sand.u32 %s214, 1
          %s2017 = smul.addr %s2016, 16
          %s2018 = scalar_lea.vmem [#allocation2], %s2017
          %2019 = dma.done %s2015, 256
        $region64: #{tpu_custom_call.1} parent=59 // pred_fallthru
          _
      $region60: #{tpu_custom_call.1} parent=5 // pred_fallthru
        _
    $region6: #{tpu_custom_call.1} parent=1 // loop_footer
      %s21 = sadd.s32 1, %s17
    $region7: #{tpu_custom_call.1} parent=1 // loop_footer_branch
      %16 = sbr.rel target = $region3
    $region8: #{tpu_custom_call.1} parent=1 // loop_exit
      _
    %2020 = vsyncpa [#allocation3], 1
    %s2021 = scalar_lea.sflag [#allocation3], 1
    %2022 = vsyncpa %s2021, 1

</llo_original>
